<compile_context>
chip_gen: v6e
topology: v6e:2x2x1
jax: 0.10.0
libtpu: 0.0.40
codegen_flags: <defaults>
</compile_context>

<pallas_src>
import functools

import jax
import jax.numpy as jnp
from jax.experimental import pallas as pl
from jax.experimental.pallas import tpu as pltpu


# ---------------------------------------------------------------------------
# In-kernel helpers
# ---------------------------------------------------------------------------
def _layer_norm_f32(x32, eps=1e-5):
    """PyTorch LayerNorm semantics computed in f32 (fp16-safe), WITHOUT the
    affine tail — gamma/beta are folded into the following linear layer."""
    mu = jnp.mean(x32, axis=-1, keepdims=True)
    xc = x32 - mu
    var = jnp.mean(xc * xc, axis=-1, keepdims=True)
    return xc * jax.lax.rsqrt(var + eps)


# ---------------------------------------------------------------------------
# Kernel
# ---------------------------------------------------------------------------
def _residual_block_kernel(
    x_ref,                                   # (L, B_TILE, D)  input dtype
    w_in_ref, b_in_ref,                      # (D, 3D) bf16, (1, 3D) f32  (LN1 + q-scale folded)
    w_out_ref, b_out_ref,                    # (D, D)  bf16, (1, D)  f32
    w_fc_ref, b_fc_ref,                      # (D, 4D) bf16, (1, 4D) f32  (LN2 folded)
    w_pr_ref, b_pr_ref,                      # (4D, D) bf16, (1, D)  f32
    o_ref,                                   # (L, B_TILE, D)
    *, n_head: int,
):
    L, B, D = x_ref.shape
    hd = D // n_head
    mxdt = w_in_ref.dtype                    # MXU dtype (bf16)

    x32 = x_ref[...].astype(jnp.float32)     # (L, B, D)

    # ---- x = x + attn(ln_1(x)) ----------------------------------------------
    # LN1 affine and the 1/sqrt(hd) q-scale are folded into w_in/b_in.
    x1 = _layer_norm_f32(x32).reshape(L * B, D).astype(mxdt)
    qkv = jnp.dot(x1, w_in_ref[...],
                  preferred_element_type=jnp.float32) + b_in_ref[0]   # (L*B, 3D) f32
    q = qkv[:, 0 * D:1 * D]
    k = qkv[:, 1 * D:2 * D]
    v = qkv[:, 2 * D:3 * D]

    def to_heads(t):  # (L*B, D) f32 -> (B*H, L, hd) mxdt
        t4 = t.astype(mxdt).reshape(L, B, n_head, hd)
        return jnp.transpose(t4, (1, 2, 0, 3)).reshape(B * n_head, L, hd)

    qh, kh, vh = to_heads(q), to_heads(k), to_heads(v)

    s = jnp.einsum("nqd,nkd->nqk", qh, kh,
                   preferred_element_type=jnp.float32)                # (B*H, L, L)
    s = s - jnp.max(s, axis=-1, keepdims=True)
    p = jnp.exp(s)                                                    # un-normalized probs
    denom = jnp.sum(p, axis=-1, keepdims=True)                        # (B*H, L, 1)
    ctx = jnp.einsum("nqk,nkd->nqd", p.astype(mxdt), vh,
                     preferred_element_type=jnp.float32)              # (B*H, L, hd)
    # Post-PV normalization: scale the small (L, hd) context instead of the
    # (L, L) probability matrix.
    ctx = ctx * pl.reciprocal(denom, approx=True)

    ctx = jnp.transpose(ctx.reshape(B, n_head, L, hd),
                        (2, 0, 1, 3)).reshape(L * B, D)               # (L*B, D) f32

    attn = jnp.dot(ctx.astype(mxdt), w_out_ref[...],
                   preferred_element_type=jnp.float32) + b_out_ref[0]
    xa = x32 + attn.reshape(L, B, D)                                  # f32 residual

    # ---- x = x + mlp(ln_2(x)) -------------------------------------------------
    x2 = _layer_norm_f32(xa).reshape(L * B, D).astype(mxdt)
    h = jnp.dot(x2, w_fc_ref[...],
                preferred_element_type=jnp.float32) + b_fc_ref[0]     # (L*B, 4D) f32
    h = h * jax.nn.sigmoid(1.702 * h)                                 # QuickGELU
    mlp = jnp.dot(h.astype(mxdt), w_pr_ref[...],
                  preferred_element_type=jnp.float32) + b_pr_ref[0]

    o_ref[...] = (xa + mlp.reshape(L, B, D)).astype(o_ref.dtype)


# ---------------------------------------------------------------------------
# Host-side weight preparation (done once per block)
# ---------------------------------------------------------------------------
def prepare_kernel_params(params, n_head, matmul_dtype=jnp.bfloat16):
    """Pre-transpose every nn.Linear weight to (D_in, D_out), fold LN1/LN2
    gamma/beta into the following projection, fold 1/sqrt(head_dim) into the Q
    columns of the fused QKV projection, cast matmul weights to bf16, keep
    biases in f32 (added to the f32 MXU accumulator)."""
    f32 = jnp.float32

    g1 = jnp.asarray(params["ln1_w"], f32)
    be1 = jnp.asarray(params["ln1_b"], f32)
    g2 = jnp.asarray(params["ln2_w"], f32)
    be2 = jnp.asarray(params["ln2_b"], f32)

    w_in = jnp.asarray(params["in_proj_weight"], f32).T     # (D, 3D)
    b_in = jnp.asarray(params["in_proj_bias"], f32)         # (3D,)
    w_out = jnp.asarray(params["out_proj_weight"], f32).T   # (D, D)
    b_out = jnp.asarray(params["out_proj_bias"], f32)       # (D,)
    w_fc = jnp.asarray(params["c_fc_weight"], f32).T        # (D, 4D)
    b_fc = jnp.asarray(params["c_fc_bias"], f32)            # (4D,)
    w_pr = jnp.asarray(params["c_proj_weight"], f32).T      # (4D, D)
    b_pr = jnp.asarray(params["c_proj_bias"], f32)          # (D,)

    def fold_ln(gamma, beta, w, b):
        # (gamma*norm(x) + beta) @ W + b == norm(x) @ (gamma[:,None]*W) + (beta@W + b)
        return gamma[:, None] * w, beta @ w + b

    w_in, b_in = fold_ln(g1, be1, w_in, b_in)
    w_fc, b_fc = fold_ln(g2, be2, w_fc, b_fc)

    D = g1.shape[0]
    hd = D // n_head
    scale = 1.0 / float(hd) ** 0.5
    col_scale = jnp.concatenate(
        [jnp.full((D,), scale, f32), jnp.ones((2 * D,), f32)])
    w_in = w_in * col_scale[None, :]
    b_in = b_in * col_scale

    def row(v):
        return v.reshape(1, -1)

    mx = matmul_dtype
    return (w_in.astype(mx), row(b_in),
            w_out.astype(mx), row(b_out),
            w_fc.astype(mx), row(b_fc),
            w_pr.astype(mx), row(b_pr))


# ---------------------------------------------------------------------------
# Wrapper
# ---------------------------------------------------------------------------
def _vmem_limit_bytes(frac=0.85):
    """Generation-aware VMEM cap with headroom (~54 MiB on v7x, ~108 MiB on
    v5e/v6e).  Conservative 64 MiB fallback if the query is unavailable."""
    try:
        info = pltpu.get_tpu_info()
        cap = int(getattr(info, "vmem_capacity_bytes", 64 * 1024 * 1024))
    except Exception:
        cap = 64 * 1024 * 1024
    return int(cap * frac)


def _choose_b_tile(N, L, D, n_head, weight_bytes, vmem_limit):
    """Batch tile per grid step: whole batch if it fits, else the largest
    multiple-of-8 divisor of N (sublane-friendly second-minor block dim)."""
    # Rough per-sequence f32 activation footprint (projections + scores).
    per_seq = 4 * L * 14 * D + 2 * 4 * n_head * L * L
    budget = max(vmem_limit - weight_bytes - (8 << 20), per_seq)
    max_b = max(1, budget // per_seq)
    candidates = [N] + [b for b in range(8, N, 8) if N % b == 0]
    fitting = [b for b in candidates if b <= max_b]
    return max(fitting) if fitting else min(candidates)


def make_residual_attention_block(params, n_head, *,
                                  matmul_dtype=jnp.bfloat16, b_tile=None):
    """Prepare weights once and return a jitted callable x:(L,N,D) -> (L,N,D)."""
    kparams = prepare_kernel_params(params, n_head, matmul_dtype)
    vmem_limit = _vmem_limit_bytes()
    weight_bytes = sum(int(w.size) * jnp.dtype(w.dtype).itemsize for w in kparams)

    def apply(x):
        L, N, D = x.shape
        assert D % n_head == 0, "d_model must be divisible by n_head"
        bt = b_tile if b_tile is not None else _choose_b_tile(
            N, L, D, n_head, weight_bytes, vmem_limit)
        assert N % bt == 0, "batch tile must divide batch"

        in_specs = [pl.BlockSpec((L, bt, D), lambda b: (0, b, 0))]
        # Constant weight blocks: single-buffered (no point double-buffering).
        in_specs += [
            pl.BlockSpec(w.shape, lambda b: (0, 0), pipeline_mode=pl.Buffered(1))
            for w in kparams
        ]
        out_specs = pl.BlockSpec((L, bt, D), lambda b: (0, b, 0))

        return pl.pallas_call(
            functools.partial(_residual_block_kernel, n_head=n_head),
            out_shape=jax.ShapeDtypeStruct((L, N, D), x.dtype),
            grid_spec=pltpu.PrefetchScalarGridSpec(
                num_scalar_prefetch=0,
                grid=(N // bt,),
                in_specs=in_specs,
                out_specs=out_specs,
            ),
            compiler_params=pltpu.CompilerParams(
                dimension_semantics=("parallel",),
                vmem_limit_bytes=vmem_limit,
            ),
        )(x, *kparams)

    return jax.jit(apply)


# ---------------------------------------------------------------------------
# Parameters + pure-JAX reference (correctness check)
# ---------------------------------------------------------------------------
def init_params(key, d_model):
    D = d_model
    ks = jax.random.split(key, 8)
    std = 0.02
    return {
        "ln1_w": jnp.ones((D,), jnp.float32),
        "ln1_b": jnp.zeros((D,), jnp.float32),
        "in_proj_weight": jax.random.normal(ks[0], (3 * D, D), jnp.float32) * std,
        "in_proj_bias": jax.random.normal(ks[1], (3 * D,), jnp.float32) * std,
        "out_proj_weight": jax.random.normal(ks[2], (D, D), jnp.float32) * std,
        "out_proj_bias": jax.random.normal(ks[3], (D,), jnp.float32) * std,
        "ln2_w": jnp.ones((D,), jnp.float32),
        "ln2_b": jnp.zeros((D,), jnp.float32),
        "c_fc_weight": jax.random.normal(ks[4], (4 * D, D), jnp.float32) * std,
        "c_fc_bias": jax.random.normal(ks[5], (4 * D,), jnp.float32) * std,
        "c_proj_weight": jax.random.normal(ks[6], (D, 4 * D), jnp.float32) * std,
        "c_proj_bias": jax.random.normal(ks[7], (D,), jnp.float32) * std,
    }


def reference_block(x, p, n_head):
    """Pure-JAX f32 reference matching the PyTorch module."""
    L, N, D = x.shape
    hd = D // n_head

    def ln(v, w, b):
        mu = v.mean(-1, keepdims=True)
        var = ((v - mu) ** 2).mean(-1, keepdims=True)
        return (v - mu) / jnp.sqrt(var + 1e-5) * w + b

    x1 = ln(x, p["ln1_w"], p["ln1_b"])
    qkv = x1 @ p["in_proj_weight"].T + p["in_proj_bias"]
    q, k, v = jnp.split(qkv, 3, axis=-1)

    def sh(t):  # (L, N, D) -> (N, H, L, hd)
        return jnp.transpose(t.reshape(L, N, n_head, hd), (1, 2, 0, 3))

    qh, kh, vh = sh(q) / jnp.sqrt(hd), sh(k), sh(v)
    s = jnp.einsum("nhqd,nhkd->nhqk", qh, kh)
    pr = jax.nn.softmax(s, axis=-1)
    ctx = jnp.einsum("nhqk,nhkd->nhqd", pr, vh)
    ctx = jnp.transpose(ctx, (2, 0, 1, 3)).reshape(L, N, D)
    attn = ctx @ p["out_proj_weight"].T + p["out_proj_bias"]
    x = x + attn

    x2 = ln(x, p["ln2_w"], p["ln2_b"])
    h = x2 @ p["c_fc_weight"].T + p["c_fc_bias"]
    h = h * jax.nn.sigmoid(1.702 * h)
    return x + h @ p["c_proj_weight"].T + p["c_proj_bias"]


if __name__ == "__main__":
    # Small shapes: seq L=8, batch N=2, d_model D=32, heads=4 (head_dim=8).
    L, N, D, H = 8, 2, 32, 4
    key = jax.random.PRNGKey(0)
    k_x, k_p = jax.random.split(key)

    x = jax.random.normal(k_x, (L, N, D), jnp.float32)
    params = init_params(k_p, D)

    block = make_residual_attention_block(params, n_head=H)
    y = jax.block_until_ready(block(x))
    assert y.shape == (L, N, D)

    y_ref = reference_block(x, params, H)
    assert bool(jnp.allclose(y, y_ref, atol=5e-2, rtol=5e-2)), "mismatch vs reference"
    print("KERNEL_OK")
</pallas_src>

<mosaic_0001>
module attributes {stable_mosaic.version = 11 : i64} {
  func.func @_residual_block_kernel(%arg0: i32, %arg1: memref<8x2x32xf32, #tpu.memory_space<vmem>>, %arg2: memref<32x96xbf16, #tpu.memory_space<vmem>>, %arg3: memref<1x96xf32, #tpu.memory_space<vmem>>, %arg4: memref<32x32xbf16, #tpu.memory_space<vmem>>, %arg5: memref<1x32xf32, #tpu.memory_space<vmem>>, %arg6: memref<32x128xbf16, #tpu.memory_space<vmem>>, %arg7: memref<1x128xf32, #tpu.memory_space<vmem>>, %arg8: memref<128x32xbf16, #tpu.memory_space<vmem>>, %arg9: memref<1x32xf32, #tpu.memory_space<vmem>>, %arg10: memref<8x2x32xf32, #tpu.memory_space<vmem>>) attributes {dimension_semantics = [#tpu.dimension_semantics<parallel>], iteration_bounds = array<i64: 1>, scalar_prefetch = 0 : i64, scratch_operands = 0 : i64, tpu.core_type = #tpu.core_type<tc>, window_params = [{transform_indices = @transform_0, window_bounds = array<i64: 8, 2, 32>}, {pipeline_mode = #tpu.pipeline_mode<synchronous>, transform_indices = @transform_1, window_bounds = array<i64: 32, 96>}, {pipeline_mode = #tpu.pipeline_mode<synchronous>, transform_indices = @transform_2, window_bounds = array<i64: 1, 96>}, {pipeline_mode = #tpu.pipeline_mode<synchronous>, transform_indices = @transform_3, window_bounds = array<i64: 32, 32>}, {pipeline_mode = #tpu.pipeline_mode<synchronous>, transform_indices = @transform_4, window_bounds = array<i64: 1, 32>}, {pipeline_mode = #tpu.pipeline_mode<synchronous>, transform_indices = @transform_5, window_bounds = array<i64: 32, 128>}, {pipeline_mode = #tpu.pipeline_mode<synchronous>, transform_indices = @transform_6, window_bounds = array<i64: 1, 128>}, {pipeline_mode = #tpu.pipeline_mode<synchronous>, transform_indices = @transform_7, window_bounds = array<i64: 128, 32>}, {pipeline_mode = #tpu.pipeline_mode<synchronous>, transform_indices = @transform_8, window_bounds = array<i64: 1, 32>}, {transform_indices = @transform_9, window_bounds = array<i64: 8, 2, 32>}]} {
    %c0 = arith.constant 0 : index
    %c0_0 = arith.constant 0 : index
    %c0_1 = arith.constant 0 : index
    %0 = vector.load %arg1[%c0, %c0_0, %c0_1] : memref<8x2x32xf32, #tpu.memory_space<vmem>>, vector<8x2x32xf32>
    %cst = arith.constant dense<0.000000e+00> : vector<8x2xf32>
    %1 = vector.multi_reduction <add>, %0, %cst [2] : vector<8x2x32xf32> to vector<8x2xf32>
    %2 = vector.shape_cast %1 : vector<8x2xf32> to vector<8x2x1xf32>
    %cst_2 = arith.constant 3.200000e+01 : f32
    %3 = vector.broadcast %cst_2 : f32 to vector<8x2x1xf32>
    %4 = arith.divf %2, %3 : vector<8x2x1xf32>
    %5 = vector.broadcast %4 : vector<8x2x1xf32> to vector<8x2x32xf32>
    %6 = arith.subf %0, %5 : vector<8x2x32xf32>
    %7 = arith.mulf %6, %6 : vector<8x2x32xf32>
    %cst_3 = arith.constant dense<0.000000e+00> : vector<8x2xf32>
    %8 = vector.multi_reduction <add>, %7, %cst_3 [2] : vector<8x2x32xf32> to vector<8x2xf32>
    %9 = vector.shape_cast %8 : vector<8x2xf32> to vector<8x2x1xf32>
    %cst_4 = arith.constant 3.200000e+01 : f32
    %10 = vector.broadcast %cst_4 : f32 to vector<8x2x1xf32>
    %11 = arith.divf %9, %10 : vector<8x2x1xf32>
    %cst_5 = arith.constant 9.99999974E-6 : f32
    %12 = vector.broadcast %cst_5 : f32 to vector<8x2x1xf32>
    %13 = arith.addf %11, %12 : vector<8x2x1xf32>
    %14 = math.rsqrt %13 : vector<8x2x1xf32>
    %15 = vector.broadcast %14 : vector<8x2x1xf32> to vector<8x2x32xf32>
    %16 = arith.mulf %6, %15 : vector<8x2x32xf32>
    %17 = vector.shape_cast %16 : vector<8x2x32xf32> to vector<16x32xf32>
    %18 = arith.truncf %17 : vector<16x32xf32> to vector<16x32xbf16>
    %c0_6 = arith.constant 0 : index
    %c0_7 = arith.constant 0 : index
    %19 = vector.load %arg2[%c0_6, %c0_7] : memref<32x96xbf16, #tpu.memory_space<vmem>>, vector<32x96xbf16>
    %cst_8 = arith.constant dense<0.000000e+00> : vector<16x96xf32>
    %20 = tpu.matmul %18, %19, %cst_8 {dimension_numbers = #tpu.dot_dimension_numbers<[1], [0], [0], [1], [0, 0, 1, 1], [], []>} : vector<16x32xbf16>, vector<32x96xbf16>, vector<16x96xf32> -> vector<16x96xf32>
    %c0_9 = arith.constant 0 : index
    %c0_10 = arith.constant 0 : index
    %21 = vector.load %arg3[%c0_9, %c0_10] : memref<1x96xf32, #tpu.memory_space<vmem>>, vector<1x96xf32>
    %22 = vector.shape_cast %21 : vector<1x96xf32> to vector<96xf32>
    %23 = vector.shape_cast %22 : vector<96xf32> to vector<1x96xf32>
    %24 = vector.broadcast %23 : vector<1x96xf32> to vector<16x96xf32>
    %25 = arith.addf %20, %24 : vector<16x96xf32>
    %26 = vector.extract_strided_slice %25 {offsets = [0, 0], sizes = [16, 32], strides = [1, 1]} : vector<16x96xf32> to vector<16x32xf32>
    %27 = vector.extract_strided_slice %25 {offsets = [0, 32], sizes = [16, 32], strides = [1, 1]} : vector<16x96xf32> to vector<16x32xf32>
    %28 = vector.extract_strided_slice %25 {offsets = [0, 64], sizes = [16, 32], strides = [1, 1]} : vector<16x96xf32> to vector<16x32xf32>
    %29 = arith.truncf %26 : vector<16x32xf32> to vector<16x32xbf16>
    %30 = vector.shape_cast %29 : vector<16x32xbf16> to vector<8x2x4x8xbf16>
    %31 = tpu.transpose %30, [1, 2, 0, 3] : vector<8x2x4x8xbf16> -> vector<2x4x8x8xbf16>
    %32 = vector.shape_cast %31 : vector<2x4x8x8xbf16> to vector<8x8x8xbf16>
    %33 = arith.truncf %27 : vector<16x32xf32> to vector<16x32xbf16>
    %34 = vector.shape_cast %33 : vector<16x32xbf16> to vector<8x2x4x8xbf16>
    %35 = tpu.transpose %34, [1, 2, 0, 3] : vector<8x2x4x8xbf16> -> vector<2x4x8x8xbf16>
    %36 = vector.shape_cast %35 : vector<2x4x8x8xbf16> to vector<8x8x8xbf16>
    %37 = arith.truncf %28 : vector<16x32xf32> to vector<16x32xbf16>
    %38 = vector.shape_cast %37 : vector<16x32xbf16> to vector<8x2x4x8xbf16>
    %39 = tpu.transpose %38, [1, 2, 0, 3] : vector<8x2x4x8xbf16> -> vector<2x4x8x8xbf16>
    %40 = vector.shape_cast %39 : vector<2x4x8x8xbf16> to vector<8x8x8xbf16>
    "tpu.trace_start"() <{level = 10 : i32, message = "nqd,nkd->nqk"}> : () -> ()
    %cst_11 = arith.constant dense<0.000000e+00> : vector<8x8x8xf32>
    %41 = tpu.matmul %32, %36, %cst_11 {dimension_numbers = #tpu.dot_dimension_numbers<[2], [2], [1], [1], [0, 0, 0, 1, 1, 1], [0], [0]>} : vector<8x8x8xbf16>, vector<8x8x8xbf16>, vector<8x8x8xf32> -> vector<8x8x8xf32>
    "tpu.trace_stop"() : () -> ()
    %cst_12 = arith.constant dense<0xFF800000> : vector<8x8xf32>
    %42 = vector.multi_reduction <maximumf>, %41, %cst_12 [2] : vector<8x8x8xf32> to vector<8x8xf32>
    %43 = vector.shape_cast %42 : vector<8x8xf32> to vector<8x8x1xf32>
    %44 = vector.broadcast %43 : vector<8x8x1xf32> to vector<8x8x8xf32>
    %45 = arith.subf %41, %44 : vector<8x8x8xf32>
    %46 = math.exp %45 : vector<8x8x8xf32>
    %cst_13 = arith.constant dense<0.000000e+00> : vector<8x8xf32>
    %47 = vector.multi_reduction <add>, %46, %cst_13 [2] : vector<8x8x8xf32> to vector<8x8xf32>
    %48 = vector.shape_cast %47 : vector<8x8xf32> to vector<8x8x1xf32>
    %49 = arith.truncf %46 : vector<8x8x8xf32> to vector<8x8x8xbf16>
    "tpu.trace_start"() <{level = 10 : i32, message = "nqk,nkd->nqd"}> : () -> ()
    %cst_14 = arith.constant dense<0.000000e+00> : vector<8x8x8xf32>
    %50 = tpu.matmul %49, %40, %cst_14 {dimension_numbers = #tpu.dot_dimension_numbers<[2], [1], [1], [2], [0, 0, 0, 1, 1, 2], [0], [0]>} : vector<8x8x8xbf16>, vector<8x8x8xbf16>, vector<8x8x8xf32> -> vector<8x8x8xf32>
    "tpu.trace_stop"() : () -> ()
    %51 = tpu.reciprocal %48 {approx = true} : vector<8x8x1xf32> -> vector<8x8x1xf32>
    %52 = vector.broadcast %51 : vector<8x8x1xf32> to vector<8x8x8xf32>
    %53 = arith.mulf %50, %52 : vector<8x8x8xf32>
    %54 = vector.shape_cast %53 : vector<8x8x8xf32> to vector<2x4x8x8xf32>
    %55 = tpu.transpose %54, [2, 0, 1, 3] : vector<2x4x8x8xf32> -> vector<8x2x4x8xf32>
    %56 = vector.shape_cast %55 : vector<8x2x4x8xf32> to vector<16x32xf32>
    %57 = arith.truncf %56 : vector<16x32xf32> to vector<16x32xbf16>
    %c0_15 = arith.constant 0 : index
    %c0_16 = arith.constant 0 : index
    %58 = vector.load %arg4[%c0_15, %c0_16] : memref<32x32xbf16, #tpu.memory_space<vmem>>, vector<32x32xbf16>
    %cst_17 = arith.constant dense<0.000000e+00> : vector<16x32xf32>
    %59 = tpu.matmul %57, %58, %cst_17 {dimension_numbers = #tpu.dot_dimension_numbers<[1], [0], [0], [1], [0, 0, 1, 1], [], []>} : vector<16x32xbf16>, vector<32x32xbf16>, vector<16x32xf32> -> vector<16x32xf32>
    %c0_18 = arith.constant 0 : index
    %c0_19 = arith.constant 0 : index
    %60 = vector.load %arg5[%c0_18, %c0_19] : memref<1x32xf32, #tpu.memory_space<vmem>>, vector<1x32xf32>
    %61 = vector.shape_cast %60 : vector<1x32xf32> to vector<32xf32>
    %62 = vector.shape_cast %61 : vector<32xf32> to vector<1x32xf32>
    %63 = vector.broadcast %62 : vector<1x32xf32> to vector<16x32xf32>
    %64 = arith.addf %59, %63 : vector<16x32xf32>
    %65 = vector.shape_cast %64 : vector<16x32xf32> to vector<8x2x32xf32>
    %66 = arith.addf %0, %65 : vector<8x2x32xf32>
    %cst_20 = arith.constant dense<0.000000e+00> : vector<8x2xf32>
    %67 = vector.multi_reduction <add>, %66, %cst_20 [2] : vector<8x2x32xf32> to vector<8x2xf32>
    %68 = vector.shape_cast %67 : vector<8x2xf32> to vector<8x2x1xf32>
    %cst_21 = arith.constant 3.200000e+01 : f32
    %69 = vector.broadcast %cst_21 : f32 to vector<8x2x1xf32>
    %70 = arith.divf %68, %69 : vector<8x2x1xf32>
    %71 = vector.broadcast %70 : vector<8x2x1xf32> to vector<8x2x32xf32>
    %72 = arith.subf %66, %71 : vector<8x2x32xf32>
    %73 = arith.mulf %72, %72 : vector<8x2x32xf32>
    %cst_22 = arith.constant dense<0.000000e+00> : vector<8x2xf32>
    %74 = vector.multi_reduction <add>, %73, %cst_22 [2] : vector<8x2x32xf32> to vector<8x2xf32>
    %75 = vector.shape_cast %74 : vector<8x2xf32> to vector<8x2x1xf32>
    %cst_23 = arith.constant 3.200000e+01 : f32
    %76 = vector.broadcast %cst_23 : f32 to vector<8x2x1xf32>
    %77 = arith.divf %75, %76 : vector<8x2x1xf32>
    %cst_24 = arith.constant 9.99999974E-6 : f32
    %78 = vector.broadcast %cst_24 : f32 to vector<8x2x1xf32>
    %79 = arith.addf %77, %78 : vector<8x2x1xf32>
    %80 = math.rsqrt %79 : vector<8x2x1xf32>
    %81 = vector.broadcast %80 : vector<8x2x1xf32> to vector<8x2x32xf32>
    %82 = arith.mulf %72, %81 : vector<8x2x32xf32>
    %83 = vector.shape_cast %82 : vector<8x2x32xf32> to vector<16x32xf32>
    %84 = arith.truncf %83 : vector<16x32xf32> to vector<16x32xbf16>
    %c0_25 = arith.constant 0 : index
    %c0_26 = arith.constant 0 : index
    %85 = vector.load %arg6[%c0_25, %c0_26] : memref<32x128xbf16, #tpu.memory_space<vmem>>, vector<32x128xbf16>
    %cst_27 = arith.constant dense<0.000000e+00> : vector<16x128xf32>
    %86 = tpu.matmul %84, %85, %cst_27 {dimension_numbers = #tpu.dot_dimension_numbers<[1], [0], [0], [1], [0, 0, 1, 1], [], []>} : vector<16x32xbf16>, vector<32x128xbf16>, vector<16x128xf32> -> vector<16x128xf32>
    %c0_28 = arith.constant 0 : index
    %c0_29 = arith.constant 0 : index
    %87 = vector.load %arg7[%c0_28, %c0_29] : memref<1x128xf32, #tpu.memory_space<vmem>>, vector<1x128xf32>
    %88 = vector.shape_cast %87 : vector<1x128xf32> to vector<128xf32>
    %89 = vector.shape_cast %88 : vector<128xf32> to vector<1x128xf32>
    %90 = vector.broadcast %89 : vector<1x128xf32> to vector<16x128xf32>
    %91 = arith.addf %86, %90 : vector<16x128xf32>
    %cst_30 = arith.constant 1.702000e+00 : f32
    %92 = vector.broadcast %cst_30 : f32 to vector<16x128xf32>
    %93 = arith.mulf %92, %91 : vector<16x128xf32>
    %94 = arith.negf %93 : vector<16x128xf32>
    %95 = math.exp %94 : vector<16x128xf32>
    %cst_31 = arith.constant 1.000000e+00 : f32
    %96 = vector.broadcast %cst_31 : f32 to vector<16x128xf32>
    %97 = arith.addf %96, %95 : vector<16x128xf32>
    %98 = arith.divf %96, %97 : vector<16x128xf32>
    %99 = arith.mulf %91, %98 : vector<16x128xf32>
    %100 = arith.truncf %99 : vector<16x128xf32> to vector<16x128xbf16>
    %c0_32 = arith.constant 0 : index
    %c0_33 = arith.constant 0 : index
    %101 = vector.load %arg8[%c0_32, %c0_33] : memref<128x32xbf16, #tpu.memory_space<vmem>>, vector<128x32xbf16>
    %cst_34 = arith.constant dense<0.000000e+00> : vector<16x32xf32>
    %102 = tpu.matmul %100, %101, %cst_34 {dimension_numbers = #tpu.dot_dimension_numbers<[1], [0], [0], [1], [0, 0, 1, 1], [], []>} : vector<16x128xbf16>, vector<128x32xbf16>, vector<16x32xf32> -> vector<16x32xf32>
    %c0_35 = arith.constant 0 : index
    %c0_36 = arith.constant 0 : index
    %103 = vector.load %arg9[%c0_35, %c0_36] : memref<1x32xf32, #tpu.memory_space<vmem>>, vector<1x32xf32>
    %104 = vector.shape_cast %103 : vector<1x32xf32> to vector<32xf32>
    %105 = vector.shape_cast %104 : vector<32xf32> to vector<1x32xf32>
    %106 = vector.broadcast %105 : vector<1x32xf32> to vector<16x32xf32>
    %107 = arith.addf %102, %106 : vector<16x32xf32>
    %108 = vector.shape_cast %107 : vector<16x32xf32> to vector<8x2x32xf32>
    %109 = arith.addf %66, %108 : vector<8x2x32xf32>
    %c0_37 = arith.constant 0 : index
    %c0_38 = arith.constant 0 : index
    %c0_39 = arith.constant 0 : index
    %110 = vector.load %arg10[%c0_37, %c0_38, %c0_39] : memref<8x2x32xf32, #tpu.memory_space<vmem>>, vector<8x2x32xf32>
    tpu.vector_store %arg10[%c0_37, %c0_38, %c0_39], %109 {strides = array<i32>} : memref<8x2x32xf32, #tpu.memory_space<vmem>>, vector<8x2x32xf32>,
    return
  }
  func.func @transform_0(%arg0: i32) -> (i32, i32, i32) {
    %c0_i32 = arith.constant 0 : i32
    %c0_i32_0 = arith.constant 0 : i32
    %c0_i32_1 = arith.constant 0 : i32
    return %c0_i32, %arg0, %c0_i32_0 : i32, i32, i32
  }
  func.func @transform_1(%arg0: i32) -> (i32, i32) {
    %c0_i32 = arith.constant 0 : i32
    %c0_i32_0 = arith.constant 0 : i32
    %c0_i32_1 = arith.constant 0 : i32
    return %c0_i32, %c0_i32_0 : i32, i32
  }
  func.func @transform_2(%arg0: i32) -> (i32, i32) {
    %c0_i32 = arith.constant 0 : i32
    %c0_i32_0 = arith.constant 0 : i32
    %c0_i32_1 = arith.constant 0 : i32
    return %c0_i32, %c0_i32_0 : i32, i32
  }
  func.func @transform_3(%arg0: i32) -> (i32, i32) {
    %c0_i32 = arith.constant 0 : i32
    %c0_i32_0 = arith.constant 0 : i32
    %c0_i32_1 = arith.constant 0 : i32
    return %c0_i32, %c0_i32_0 : i32, i32
  }
  func.func @transform_4(%arg0: i32) -> (i32, i32) {
    %c0_i32 = arith.constant 0 : i32
    %c0_i32_0 = arith.constant 0 : i32
    %c0_i32_1 = arith.constant 0 : i32
    return %c0_i32, %c0_i32_0 : i32, i32
  }
  func.func @transform_5(%arg0: i32) -> (i32, i32) {
    %c0_i32 = arith.constant 0 : i32
    %c0_i32_0 = arith.constant 0 : i32
    %c0_i32_1 = arith.constant 0 : i32
    return %c0_i32, %c0_i32_0 : i32, i32
  }
  func.func @transform_6(%arg0: i32) -> (i32, i32) {
    %c0_i32 = arith.constant 0 : i32
    %c0_i32_0 = arith.constant 0 : i32
    %c0_i32_1 = arith.constant 0 : i32
    return %c0_i32, %c0_i32_0 : i32, i32
  }
  func.func @transform_7(%arg0: i32) -> (i32, i32) {
    %c0_i32 = arith.constant 0 : i32
    %c0_i32_0 = arith.constant 0 : i32
    %c0_i32_1 = arith.constant 0 : i32
    return %c0_i32, %c0_i32_0 : i32, i32
  }
  func.func @transform_8(%arg0: i32) -> (i32, i32) {
    %c0_i32 = arith.constant 0 : i32
    %c0_i32_0 = arith.constant 0 : i32
    %c0_i32_1 = arith.constant 0 : i32
    return %c0_i32, %c0_i32_0 : i32, i32
  }
  func.func @transform_9(%arg0: i32) -> (i32, i32, i32) {
    %c0_i32 = arith.constant 0 : i32
    %c0_i32_0 = arith.constant 0 : i32
    %c0_i32_1 = arith.constant 0 : i32
    return %c0_i32, %arg0, %c0_i32_0 : i32, i32, i32
  }
}

</mosaic_0001>

<llo_original>
// kernel: apply.1
$region0: #{apply.1}
  #allocation0 [shape = 'u32[]', space=smem, size = 0x4, offset = 0x4, fixed_abs, tag = 'smem constant byte address 0x4 - core index']
  #allocation1 [shape = 'u32[144,128]{1,0:T(1,128)}', space=vmem, size = 0x12000, scoped, tag = 'internal scratch']
  %s0 = inlined_call_operand.hbm [shape: f32[8,2,32], index: 0, kind: input, shape index: {}]
  %s1 = inlined_call_operand.hbm [shape: bf16[32,96], index: 1, kind: input, shape index: {}]
  %s2 = inlined_call_operand.hbm [shape: f32[1,96], index: 2, kind: input, shape index: {}]
  %s3 = inlined_call_operand.hbm [shape: bf16[32,32], index: 3, kind: input, shape index: {}]
  %s4 = inlined_call_operand.vmem [shape: f32[1,32], index: 4, kind: input, shape index: {}]
  %s5 = inlined_call_operand.hbm [shape: bf16[32,128], index: 5, kind: input, shape index: {}]
  %s6 = inlined_call_operand.vmem [shape: f32[1,128], index: 6, kind: input, shape index: {}]
  %s7 = inlined_call_operand.hbm [shape: bf16[128,32], index: 7, kind: input, shape index: {}]
  %s8 = inlined_call_operand.vmem [shape: f32[1,32], index: 8, kind: input, shape index: {}]
  %s9 = inlined_call_operand.hbm [shape: f32[8,2,32], index: 9, kind: output, shape index: {}]
  %s10 = sld [smem:[#allocation0]]
  $region70: #{apply.1} parent=0
    _
  %s12 = ssub.s32 1, %s10
  %s13 = scalar_select 0, %s12, %s10
  $region1: #{apply.1} parent=0
    #allocation2 [shape = 'u8[8192]{0}', space=vmem, size = 0x2000, scoped, tag = 'input window, operand 0, single buffered']
    #allocation3 [shape = 's32[1]{0}', space=sflag, size = 0x4, scoped, tag = 'scoped memory for apply.1']
    #allocation4 [shape = 's32[1]{0}', space=sflag, size = 0x4, scoped, tag = 'scoped memory for apply.1']
    #allocation5 [shape = 'u8[8192]{0}', space=vmem, size = 0x2000, scoped, tag = 'input window, operand 1, single buffered']
    #allocation6 [shape = 's32[1]{0}', space=sflag, size = 0x4, scoped, tag = 'scoped memory for apply.1']
    #allocation7 [shape = 'u8[512]{0}', space=vmem, size = 0x400, scoped, tag = 'input window, operand 2, single buffered']
    #allocation8 [shape = 'u8[8192]{0}', space=vmem, size = 0x2000, scoped, tag = 'input window, operand 3, single buffered']
    #allocation9 [shape = 's32[1]{0}', space=sflag, size = 0x4, scoped, tag = 'scoped memory for apply.1']
    #allocation10 [shape = 'u8[8192]{0}', space=vmem, size = 0x2000, scoped, tag = 'input window, operand 5, single buffered']
    #allocation11 [shape = 'u8[32768]{0}', space=vmem, size = 0x8000, scoped, tag = 'input window, operand 7, single buffered']
    #allocation12 [shape = 's32[1]{0}', space=sflag, size = 0x4, scoped, tag = 'scoped memory for apply.1']
    #allocation13 [shape = 'u8[8192]{0}', space=vmem, size = 0x2000, scoped, tag = 'output window, operand 0, single buffered']
    %14 = vsyncpa [#allocation3], 0
    %15 = vsyncpa [#allocation6], 0
    %16 = vsyncpa [#allocation9], 0
    %17 = vsyncpa [#allocation12], 0
    %18 = vsyncpa [#allocation4], 0
    // Predicated region
    $region2: #{apply.1} parent=1 // pred_check
      _
    $region3: #{apply.1} parent=1 // pred_check_branch
      %20 = sbr.rel (0) target = $region5
    $region4: #{apply.1} parent=1 // pred_region
      %s22 = ssub.s32 256, 256
      %23 = vsyncadd [#allocation3], %s22
      %s24 = sshll.u32 [#allocation2], 4
      %s25 = int_to_ptr.vmem [resolvable:$true] %s24
      %30 = dma.hbm_to_vmem [thread:$0]  %s0, 256, %s25, [#allocation3], 32, 32, 2
    $region5: #{apply.1} parent=1 // pred_fallthru
      _
    // Predicated region
    $region6: #{apply.1} parent=1 // pred_check
      _
    $region7: #{apply.1} parent=1 // pred_check_branch
      %32 = sbr.rel (0) target = $region9
    $region8: #{apply.1} parent=1 // pred_region
      %s34 = ssub.s32 256, 256
      %35 = vsyncadd [#allocation6], %s34
      %s36 = sshll.u32 [#allocation5], 4
      %s37 = int_to_ptr.vmem [resolvable:$true] %s36
      %42 = dma.hbm_to_vmem [thread:$0]  %s1, 256, %s37, [#allocation6], 64, 64, 4
    $region9: #{apply.1} parent=1 // pred_fallthru
      _
    // Predicated region
    $region10: #{apply.1} parent=1 // pred_check
      _
    $region11: #{apply.1} parent=1 // pred_check_branch
      %44 = sbr.rel (0) target = $region13
    $region12: #{apply.1} parent=1 // pred_region
      %s46 = ssub.s32 16, 16
      %47 = vsyncadd [#allocation6], %s46
      %s49 = sshll.u32 [#allocation7], 4
      %s50 = int_to_ptr.vmem [resolvable:$true] %s49
      %52 = dma.hbm_to_vmem [thread:$0]  %s2, 16, %s50, [#allocation6]
    $region13: #{apply.1} parent=1 // pred_fallthru
      _
    // Predicated region
    $region14: #{apply.1} parent=1 // pred_check
      _
    $region15: #{apply.1} parent=1 // pred_check_branch
      %54 = sbr.rel (0) target = $region17
    $region16: #{apply.1} parent=1 // pred_region
      %s56 = ssub.s32 256, 256
      %57 = vsyncadd [#allocation9], %s56
      %s58 = sshll.u32 [#allocation8], 4
      %s59 = int_to_ptr.vmem [resolvable:$true] %s58
      %64 = dma.hbm_to_vmem [thread:$0]  %s3, 256, %s59, [#allocation9], 64, 64, 4
    $region17: #{apply.1} parent=1 // pred_fallthru
      _
    // Predicated region
    $region18: #{apply.1} parent=1 // pred_check
      _
    $region19: #{apply.1} parent=1 // pred_check_branch
      %66 = sbr.rel (0) target = $region21
    $region20: #{apply.1} parent=1 // pred_region
      _
    $region21: #{apply.1} parent=1 // pred_fallthru
      _
    // Predicated region
    $region22: #{apply.1} parent=1 // pred_check
      _
    $region23: #{apply.1} parent=1 // pred_check_branch
      %68 = sbr.rel (0) target = $region25
    $region24: #{apply.1} parent=1 // pred_region
      %s70 = ssub.s32 256, 256
      %71 = vsyncadd [#allocation9], %s70
      %s72 = sshll.u32 [#allocation10], 4
      %s73 = int_to_ptr.vmem [resolvable:$true] %s72
      %78 = dma.hbm_to_vmem [thread:$0]  %s5, 256, %s73, [#allocation9], 64, 64, 4
    $region25: #{apply.1} parent=1 // pred_fallthru
      _
    // Predicated region
    $region26: #{apply.1} parent=1 // pred_check
      _
    $region27: #{apply.1} parent=1 // pred_check_branch
      %80 = sbr.rel (0) target = $region29
    $region28: #{apply.1} parent=1 // pred_region
      _
    $region29: #{apply.1} parent=1 // pred_fallthru
      _
    // Predicated region
    $region30: #{apply.1} parent=1 // pred_check
      _
    $region31: #{apply.1} parent=1 // pred_check_branch
      %82 = sbr.rel (0) target = $region33
    $region32: #{apply.1} parent=1 // pred_region
      %s84 = ssub.s32 1024, 1024
      %85 = vsyncadd [#allocation12], %s84
      %s86 = sshll.u32 [#allocation11], 4
      %s87 = int_to_ptr.vmem [resolvable:$true] %s86
      %92 = dma.hbm_to_vmem [thread:$0]  %s7, 1024, %s87, [#allocation12], 64, 64, 4
    $region33: #{apply.1} parent=1 // pred_fallthru
      _
    // Predicated region
    $region34: #{apply.1} parent=1 // pred_check
      _
    $region35: #{apply.1} parent=1 // pred_check_branch
      %94 = sbr.rel (0) target = $region37
    $region36: #{apply.1} parent=1 // pred_region
      _
    $region37: #{apply.1} parent=1 // pred_fallthru
      _
    // Predicated region
    $region38: #{apply.1} parent=1 // pred_check
      _
    $region39: #{apply.1} parent=1 // pred_check_branch
      %96 = sbr.rel (0) target = $region41
    $region40: #{apply.1} parent=1 // pred_region
      %97 = dma.done [#allocation3], 256
    $region41: #{apply.1} parent=1 // pred_fallthru
      _
    // Predicated region
    $region42: #{apply.1} parent=1 // pred_check
      _
    $region43: #{apply.1} parent=1 // pred_check_branch
      %99 = sbr.rel (0) target = $region45
    $region44: #{apply.1} parent=1 // pred_region
      %100 = dma.done [#allocation6], 256
    $region45: #{apply.1} parent=1 // pred_fallthru
      _
    // Predicated region
    $region46: #{apply.1} parent=1 // pred_check
      _
    $region47: #{apply.1} parent=1 // pred_check_branch
      %102 = sbr.rel (0) target = $region49
    $region48: #{apply.1} parent=1 // pred_region
      %103 = dma.done [#allocation6], 16
    $region49: #{apply.1} parent=1 // pred_fallthru
      _
    // Predicated region
    $region50: #{apply.1} parent=1 // pred_check
      _
    $region51: #{apply.1} parent=1 // pred_check_branch
      %105 = sbr.rel (0) target = $region53
    $region52: #{apply.1} parent=1 // pred_region
      %106 = dma.done [#allocation9], 256
    $region53: #{apply.1} parent=1 // pred_fallthru
      _
    // Predicated region
    $region54: #{apply.1} parent=1 // pred_check
      _
    $region55: #{apply.1} parent=1 // pred_check_branch
      %108 = sbr.rel (0) target = $region57
    $region56: #{apply.1} parent=1 // pred_region
      %109 = dma.done [#allocation9], 256
    $region57: #{apply.1} parent=1 // pred_fallthru
      _
    // Predicated region
    $region58: #{apply.1} parent=1 // pred_check
      _
    $region59: #{apply.1} parent=1 // pred_check_branch
      %111 = sbr.rel (0) target = $region61
    $region60: #{apply.1} parent=1 // pred_region
      %112 = dma.done [#allocation12], 1024
    $region61: #{apply.1} parent=1 // pred_fallthru
      _
    %v114 = vld [vmem:[#allocation2] sm:$0x3]
    %v115 = vld [vmem:[#allocation2 + $0x2] sm:$0x3]
    %v116 = vld [vmem:[#allocation2 + $0x4] sm:$0x3]
    %v117 = vld [vmem:[#allocation2 + $0x6] sm:$0x3]
    %v118 = vld [vmem:[#allocation2 + $0x8] sm:$0x3]
    %v119 = vld [vmem:[#allocation2 + $0xa] sm:$0x3]
    %v120 = vld [vmem:[#allocation2 + $0xc] sm:$0x3]
    %v121 = vld [vmem:[#allocation2 + $0xe] sm:$0x3]
    %vm122 = vcmask 254976
    %v123 = vsel %vm122, %v114, 0.0
    %124 = vadd.xlane.f32.xlu0 %v123
    %v125 = vpop.xlane.xlu0 %124
    %v126 = vsel %vm122, %v115, 0.0
    %127 = vadd.xlane.f32.xlu0 %v126
    %v128 = vpop.xlane.xlu0 %127
    %v129 = vsel %vm122, %v116, 0.0
    %130 = vadd.xlane.f32.xlu0 %v129
    %v131 = vpop.xlane.xlu0 %130
    %v132 = vsel %vm122, %v117, 0.0
    %133 = vadd.xlane.f32.xlu0 %v132
    %v134 = vpop.xlane.xlu0 %133
    %v135 = vsel %vm122, %v118, 0.0
    %136 = vadd.xlane.f32.xlu0 %v135
    %v137 = vpop.xlane.xlu0 %136
    %v138 = vsel %vm122, %v119, 0.0
    %139 = vadd.xlane.f32.xlu0 %v138
    %v140 = vpop.xlane.xlu0 %139
    %v141 = vsel %vm122, %v120, 0.0
    %142 = vadd.xlane.f32.xlu0 %v141
    %v143 = vpop.xlane.xlu0 %142
    %v144 = vsel %vm122, %v121, 0.0
    %145 = vadd.xlane.f32.xlu0 %v144
    %v146 = vpop.xlane.xlu0 %145
    %v147 = vrcp.pop 32.0
    %v148 = vmul.f32 %v125, %v147
    %v149 = vmul.f32 %v128, %v147
    %v150 = vmul.f32 %v131, %v147
    %v151 = vmul.f32 %v134, %v147
    %v152 = vmul.f32 %v137, %v147
    %v153 = vmul.f32 %v140, %v147
    %v154 = vmul.f32 %v143, %v147
    %v155 = vmul.f32 %v146, %v147
    %v156 = vsub.f32 %v114, %v148
    %v157 = vsub.f32 %v115, %v149
    %v158 = vsub.f32 %v116, %v150
    %v159 = vsub.f32 %v117, %v151
    %v160 = vsub.f32 %v118, %v152
    %v161 = vsub.f32 %v119, %v153
    %v162 = vsub.f32 %v120, %v154
    %v163 = vsub.f32 %v121, %v155
    %v164 = vmul.f32 %v156, %v156
    %v165 = vmul.f32 %v157, %v157
    %v166 = vmul.f32 %v158, %v158
    %v167 = vmul.f32 %v159, %v159
    %v168 = vmul.f32 %v160, %v160
    %v169 = vmul.f32 %v161, %v161
    %v170 = vmul.f32 %v162, %v162
    %v171 = vmul.f32 %v163, %v163
    %v172 = vsel %vm122, %v164, 0.0
    %173 = vadd.xlane.f32.xlu0 %v172
    %v174 = vpop.xlane.xlu0 %173
    %v175 = vsel %vm122, %v165, 0.0
    %176 = vadd.xlane.f32.xlu0 %v175
    %v177 = vpop.xlane.xlu0 %176
    %v178 = vsel %vm122, %v166, 0.0
    %179 = vadd.xlane.f32.xlu0 %v178
    %v180 = vpop.xlane.xlu0 %179
    %v181 = vsel %vm122, %v167, 0.0
    %182 = vadd.xlane.f32.xlu0 %v181
    %v183 = vpop.xlane.xlu0 %182
    %v184 = vsel %vm122, %v168, 0.0
    %185 = vadd.xlane.f32.xlu0 %v184
    %v186 = vpop.xlane.xlu0 %185
    %v187 = vsel %vm122, %v169, 0.0
    %188 = vadd.xlane.f32.xlu0 %v187
    %v189 = vpop.xlane.xlu0 %188
    %v190 = vsel %vm122, %v170, 0.0
    %191 = vadd.xlane.f32.xlu0 %v190
    %v192 = vpop.xlane.xlu0 %191
    %v193 = vsel %vm122, %v171, 0.0
    %194 = vadd.xlane.f32.xlu0 %v193
    %v195 = vpop.xlane.xlu0 %194
    %v196 = vmul.f32 %v174, %v147
    %v197 = vmul.f32 %v177, %v147
    %v198 = vmul.f32 %v180, %v147
    %v199 = vmul.f32 %v183, %v147
    %v200 = vmul.f32 %v186, %v147
    %v201 = vmul.f32 %v189, %v147
    %v202 = vmul.f32 %v192, %v147
    %v203 = vmul.f32 %v195, %v147
    %v204 = vadd.f32 %v196, 1e-05
    %v205 = vadd.f32 %v197, 1e-05
    %v206 = vadd.f32 %v198, 1e-05
    %v207 = vadd.f32 %v199, 1e-05
    %v208 = vadd.f32 %v200, 1e-05
    %v209 = vadd.f32 %v201, 1e-05
    %v210 = vadd.f32 %v202, 1e-05
    %v211 = vadd.f32 %v203, 1e-05
    %v212 = vrsqrt.pop %v204
    %v213 = vrsqrt.pop %v205
    %v214 = vrsqrt.pop %v206
    %v215 = vrsqrt.pop %v207
    %v216 = vrsqrt.pop %v208
    %v217 = vrsqrt.pop %v209
    %v218 = vrsqrt.pop %v210
    %v219 = vrsqrt.pop %v211
    %v220 = vmul.f32 %v156, %v212
    %v221 = vmul.f32 %v157, %v213
    %v222 = vmul.f32 %v158, %v214
    %v223 = vmul.f32 %v159, %v215
    %v224 = vmul.f32 %v160, %v216
    %v225 = vmul.f32 %v161, %v217
    %v226 = vmul.f32 %v162, %v218
    %v227 = vmul.f32 %v163, %v219
    %v236 = vcombine.low %v220, %v221
    %v237 = vcombine.low %v222, %v223
    %v239 = vunpack.c.l.s4 1983009808
    %v240 = vunpack.c.0.s8 %v239
    %v241 = vlaneseq
    %v242 = vshrl.u32 %v241, 7
    %v243 = vsub.s32 %v240, %v242
    %v244 = vrot.slane %v236, %v243
    %v246 = vunpack.c.l.s4 1983009808
    %v247 = vunpack.c.0.s8 %v246
    %v248 = vlaneseq
    %v249 = vshrl.u32 %v248, 7
    %v250 = vsub.s32 %v247, %v249
    %v251 = vrot.slane %v237, %v250
    %v252 = vcombine.low %v244, %v251
    %v253 = vcombine.low %v224, %v225
    %v254 = vcombine.low %v226, %v227
    %v256 = vunpack.c.l.s4 1983009808
    %v257 = vunpack.c.0.s8 %v256
    %v258 = vlaneseq
    %v259 = vshrl.u32 %v258, 7
    %v260 = vsub.s32 %v257, %v259
    %v261 = vrot.slane %v253, %v260
    %v263 = vunpack.c.l.s4 1983009808
    %v264 = vunpack.c.0.s8 %v263
    %v265 = vlaneseq
    %v266 = vshrl.u32 %v265, 7
    %v267 = vsub.s32 %v264, %v266
    %v268 = vrot.slane %v254, %v267
    %v269 = vcombine.low %v261, %v268
    %v272 = vpack.c.bf16 %v269, %v252
    %v273 = vld [vmem:[#allocation5] sm:$0xf]
    %v274 = vld [vmem:[#allocation5 + $0x4] sm:$0xf]
    %v275 = vld [vmem:[#allocation5 + $0x8] sm:$0xf]
    %v276 = vld [vmem:[#allocation5 + $0xc] sm:$0xf]
    %v277 = vld [vmem:[#allocation7] sm:$0x1]
    %v279 = vlaneseq
    %v280 = vshrl.u32 %v279, 7
    %v281 = vsub.s32 0, %v280
    %v282 = vrot.slane %v277, %v281
    %v288 = vunpack.c.l.b16 %v273
    %v289 = vunpack.c.l.b16 %v274
    %v290 = vunpack.c.l.b16 %v275
    %v291 = vunpack.c.l.b16 %v276
    %v292 = vpack.c.b16 %v289, %v288
    %v293 = vpack.c.b16 %v291, %v290
    %vm296 = vcmask 261120
    %v298 = vsel %vm296, %v272, 0
    %300 = vmatprep.subr.bf16.mxu0 0
    %301 = vmatpush1.bf16.msra.mxu0 0
    %302 = vmatprep.subr.bf16.mxu0 0
    %303 = vmatpush1.bf16.msra.mxu0 0
    %304 = vmatprep.subr.bf16.mxu0 0
    %305 = vmatpush1.bf16.msra.mxu0 0
    %306 = vmatprep.subr.bf16.mxu0 0
    %307 = vmatpush1.bf16.msra.mxu0 0
    %308 = vmatprep.subr.bf16.mxu0 0
    %309 = vmatpush1.bf16.msra.mxu0 0
    %310 = vmatprep.subr.bf16.mxu0 0
    %311 = vmatpush1.bf16.msra.mxu0 0
    %312 = vmatprep.subr.bf16.mxu0 0
    %313 = vmatpush1.bf16.msra.mxu0 %v293
    %314 = vmatprep.subr.bf16.mxu0 0
    %315 = vmatpush1.bf16.msra.mxu0 %v292
    %316 = vmatprep.subr.bf16.mxu0 0
    %317 = vmatpush2.bf16.msra.mxu0 0
    %318 = vmatprep.subr.bf16.mxu0 0
    %319 = vmatpush2.bf16.msra.mxu0 0
    %320 = vmatprep.subr.bf16.mxu0 0
    %321 = vmatpush2.bf16.msra.mxu0 0
    %322 = vmatprep.subr.bf16.mxu0 0
    %323 = vmatpush2.bf16.msra.mxu0 0
    %324 = vmatprep.subr.bf16.mxu0 0
    %325 = vmatpush2.bf16.msra.mxu0 0
    %326 = vmatprep.subr.bf16.mxu0 0
    %327 = vmatpush2.bf16.msra.mxu0 0
    %328 = vmatprep.subr.bf16.mxu0 0
    %329 = vmatpush2.bf16.msra.mxu0 0
    %330 = vmatprep.subr.bf16.mxu0 0
    %331 = vmatpush2.bf16.msra.mxu0 0
    %332 = vmatprep.mubr.bf16.mxu0 0
    %333 = vmatmul.mubr.bf16.gmra.mxu0 %v298
    %v334 = vpop.f32.mrf.mxu0
    %v335 = vadd.f32 %v282, %v334
    %v336 = vpop.f32.mrf.mxu0
    %v337 = vpop.f32.mrf.mxu0
    %v338 = vadd.f32 %v282, %v337
    %v339 = vpop.f32.mrf.mxu0
    %340 = vdwg.mxu0
    %v341 = vpack.c.bf16 %v338, %v335
    %343 = vrot.lane.b32.xlu0 %v341, 120
    %v344 = vpop.permute.xlu0 %343
    %345 = vrot.lane.b32.xlu0 %v341, 112
    %v346 = vpop.permute.xlu0 %345
    %347 = vrot.lane.b32.xlu0 %v341, 104
    %v348 = vpop.permute.xlu0 %347
    %v351 = vpack.i.b16 %v344, %v341
    %v353 = vshrl.u32 %v341, 16
    %v354 = vshrl.u32 %v344, 16
    %v355 = vpack.i.b16 %v354, %v353
    %v359 = vpack.i.b16 %v348, %v346
    %v361 = vshrl.u32 %v346, 16
    %v362 = vshrl.u32 %v348, 16
    %v363 = vpack.i.b16 %v362, %v361
    %v366 = vpack.i.b16 0, 0
    %v368 = vshrl.u32 0, 16
    %v369 = vpack.i.b16 %v368, %v368
    %v371 = vcombine.high %v351, %v366
    %v373 = vunpack.c.l.s4 1983009808
    %v374 = vunpack.c.0.s8 %v373
    %v375 = vlaneseq
    %v376 = vshrl.u32 %v375, 7
    %v377 = vsub.s32 %v374, %v376
    %v378 = vrot.slane %v351, %v377
    %v380 = vunpack.c.l.s4 1983009808
    %v381 = vunpack.c.0.s8 %v380
    %v382 = vlaneseq
    %v383 = vshrl.u32 %v382, 7
    %v384 = vsub.s32 %v381, %v383
    %v385 = vrot.slane %v371, %v384
    %v386 = vcombine.high %v359, %v366
    %v388 = vunpack.c.l.s4 1983009808
    %v389 = vunpack.c.0.s8 %v388
    %v390 = vlaneseq
    %v391 = vshrl.u32 %v390, 7
    %v392 = vsub.s32 %v389, %v391
    %v393 = vrot.slane %v359, %v392
    %v395 = vunpack.c.l.s4 1983009808
    %v396 = vunpack.c.0.s8 %v395
    %v397 = vlaneseq
    %v398 = vshrl.u32 %v397, 7
    %v399 = vsub.s32 %v396, %v398
    %v400 = vrot.slane %v386, %v399
    %v401 = vcombine.low %v378, %v393
    %v402 = vcombine.high %v378, %v393
    %v404 = vunpack.c.l.s4 1934713408
    %v405 = vunpack.c.0.s8 %v404
    %v406 = vlaneseq
    %v407 = vshrl.u32 %v406, 7
    %v408 = vsub.s32 %v405, %v407
    %v409 = vrot.slane %v401, %v408
    %v411 = vunpack.c.l.s4 1934713408
    %v412 = vunpack.c.0.s8 %v411
    %v413 = vlaneseq
    %v414 = vshrl.u32 %v413, 7
    %v415 = vsub.s32 %v412, %v414
    %v416 = vrot.slane %v402, %v415
    %v417 = vcombine.low %v385, %v400
    %v418 = vcombine.high %v385, %v400
    %v420 = vunpack.c.l.s4 1934713408
    %v421 = vunpack.c.0.s8 %v420
    %v422 = vlaneseq
    %v423 = vshrl.u32 %v422, 7
    %v424 = vsub.s32 %v421, %v423
    %v425 = vrot.slane %v417, %v424
    %v427 = vunpack.c.l.s4 1934713408
    %v428 = vunpack.c.0.s8 %v427
    %v429 = vlaneseq
    %v430 = vshrl.u32 %v429, 7
    %v431 = vsub.s32 %v428, %v430
    %v432 = vrot.slane %v418, %v431
    %v433 = vcombine.high %v409, 0
    %v434 = vcombine.high %v416, 0
    %v435 = vcombine.high %v425, 0
    %v436 = vcombine.high %v432, 0
    %v437 = vcombine.high %v355, %v369
    %v439 = vunpack.c.l.s4 1983009808
    %v440 = vunpack.c.0.s8 %v439
    %v441 = vlaneseq
    %v442 = vshrl.u32 %v441, 7
    %v443 = vsub.s32 %v440, %v442
    %v444 = vrot.slane %v355, %v443
    %v446 = vunpack.c.l.s4 1983009808
    %v447 = vunpack.c.0.s8 %v446
    %v448 = vlaneseq
    %v449 = vshrl.u32 %v448, 7
    %v450 = vsub.s32 %v447, %v449
    %v451 = vrot.slane %v437, %v450
    %v452 = vcombine.high %v363, %v369
    %v454 = vunpack.c.l.s4 1983009808
    %v455 = vunpack.c.0.s8 %v454
    %v456 = vlaneseq
    %v457 = vshrl.u32 %v456, 7
    %v458 = vsub.s32 %v455, %v457
    %v459 = vrot.slane %v363, %v458
    %v461 = vunpack.c.l.s4 1983009808
    %v462 = vunpack.c.0.s8 %v461
    %v463 = vlaneseq
    %v464 = vshrl.u32 %v463, 7
    %v465 = vsub.s32 %v462, %v464
    %v466 = vrot.slane %v452, %v465
    %v467 = vcombine.low %v444, %v459
    %v468 = vcombine.high %v444, %v459
    %v470 = vunpack.c.l.s4 1934713408
    %v471 = vunpack.c.0.s8 %v470
    %v472 = vlaneseq
    %v473 = vshrl.u32 %v472, 7
    %v474 = vsub.s32 %v471, %v473
    %v475 = vrot.slane %v467, %v474
    %v477 = vunpack.c.l.s4 1934713408
    %v478 = vunpack.c.0.s8 %v477
    %v479 = vlaneseq
    %v480 = vshrl.u32 %v479, 7
    %v481 = vsub.s32 %v478, %v480
    %v482 = vrot.slane %v468, %v481
    %v483 = vcombine.low %v451, %v466
    %v484 = vcombine.high %v451, %v466
    %v486 = vunpack.c.l.s4 1934713408
    %v487 = vunpack.c.0.s8 %v486
    %v488 = vlaneseq
    %v489 = vshrl.u32 %v488, 7
    %v490 = vsub.s32 %v487, %v489
    %v491 = vrot.slane %v483, %v490
    %v493 = vunpack.c.l.s4 1934713408
    %v494 = vunpack.c.0.s8 %v493
    %v495 = vlaneseq
    %v496 = vshrl.u32 %v495, 7
    %v497 = vsub.s32 %v494, %v496
    %v498 = vrot.slane %v484, %v497
    %v499 = vcombine.high %v475, 0
    %v500 = vcombine.high %v482, 0
    %v501 = vcombine.high %v491, 0
    %v502 = vcombine.high %v498, 0
    %v503 = vcombine.low %v409, %v425
    %v505 = vunpack.c.l.s4 1983009808
    %v506 = vunpack.c.0.s8 %v505
    %v507 = vlaneseq
    %v508 = vshrl.u32 %v507, 7
    %v509 = vsub.s32 %v506, %v508
    %v510 = vrot.slane %v503, %v509
    %v511 = vcombine.low %v416, %v432
    %v513 = vunpack.c.l.s4 1983009808
    %v514 = vunpack.c.0.s8 %v513
    %v515 = vlaneseq
    %v516 = vshrl.u32 %v515, 7
    %v517 = vsub.s32 %v514, %v516
    %v518 = vrot.slane %v511, %v517
    %v519 = vcombine.low %v510, %v518
    %v521 = vunpack.c.l.s4 1934713408
    %v522 = vunpack.c.0.s8 %v521
    %v523 = vlaneseq
    %v524 = vshrl.u32 %v523, 7
    %v525 = vsub.s32 %v522, %v524
    %v526 = vrot.slane %v519, %v525
    %v527 = vcombine.high %v526, 0
    %v528 = vcombine.low %v433, %v435
    %v530 = vunpack.c.l.s4 1983009808
    %v531 = vunpack.c.0.s8 %v530
    %v532 = vlaneseq
    %v533 = vshrl.u32 %v532, 7
    %v534 = vsub.s32 %v531, %v533
    %v535 = vrot.slane %v528, %v534
    %v536 = vcombine.low %v434, %v436
    %v538 = vunpack.c.l.s4 1983009808
    %v539 = vunpack.c.0.s8 %v538
    %v540 = vlaneseq
    %v541 = vshrl.u32 %v540, 7
    %v542 = vsub.s32 %v539, %v541
    %v543 = vrot.slane %v536, %v542
    %v544 = vcombine.low %v535, %v543
    %v546 = vunpack.c.l.s4 1934713408
    %v547 = vunpack.c.0.s8 %v546
    %v548 = vlaneseq
    %v549 = vshrl.u32 %v548, 7
    %v550 = vsub.s32 %v547, %v549
    %v551 = vrot.slane %v544, %v550
    %v552 = vcombine.high %v551, 0
    %v553 = vcombine.low %v475, %v491
    %v555 = vunpack.c.l.s4 1983009808
    %v556 = vunpack.c.0.s8 %v555
    %v557 = vlaneseq
    %v558 = vshrl.u32 %v557, 7
    %v559 = vsub.s32 %v556, %v558
    %v560 = vrot.slane %v553, %v559
    %v561 = vcombine.low %v482, %v498
    %v563 = vunpack.c.l.s4 1983009808
    %v564 = vunpack.c.0.s8 %v563
    %v565 = vlaneseq
    %v566 = vshrl.u32 %v565, 7
    %v567 = vsub.s32 %v564, %v566
    %v568 = vrot.slane %v561, %v567
    %v569 = vcombine.low %v560, %v568
    %v571 = vunpack.c.l.s4 1934713408
    %v572 = vunpack.c.0.s8 %v571
    %v573 = vlaneseq
    %v574 = vshrl.u32 %v573, 7
    %v575 = vsub.s32 %v572, %v574
    %v576 = vrot.slane %v569, %v575
    %v577 = vcombine.high %v576, 0
    %v578 = vcombine.low %v499, %v501
    %v580 = vunpack.c.l.s4 1983009808
    %v581 = vunpack.c.0.s8 %v580
    %v582 = vlaneseq
    %v583 = vshrl.u32 %v582, 7
    %v584 = vsub.s32 %v581, %v583
    %v585 = vrot.slane %v578, %v584
    %v586 = vcombine.low %v500, %v502
    %v588 = vunpack.c.l.s4 1983009808
    %v589 = vunpack.c.0.s8 %v588
    %v590 = vlaneseq
    %v591 = vshrl.u32 %v590, 7
    %v592 = vsub.s32 %v589, %v591
    %v593 = vrot.slane %v586, %v592
    %v594 = vcombine.low %v585, %v593
    %v596 = vunpack.c.l.s4 1934713408
    %v597 = vunpack.c.0.s8 %v596
    %v598 = vlaneseq
    %v599 = vshrl.u32 %v598, 7
    %v600 = vsub.s32 %v597, %v599
    %v601 = vrot.slane %v594, %v600
    %v602 = vcombine.high %v601, 0
    %v605 = vpack.i.b16 %v551, %v526
    %v606 = vshrl.u32 %v526, 16
    %v607 = vshrl.u32 %v551, 16
    %v608 = vpack.i.b16 %v607, %v606
    %v611 = vpack.i.b16 %v552, %v527
    %v612 = vshrl.u32 %v527, 16
    %v613 = vshrl.u32 %v552, 16
    %v614 = vpack.i.b16 %v613, %v612
    %v617 = vpack.i.b16 %v601, %v576
    %v618 = vshrl.u32 %v576, 16
    %v619 = vshrl.u32 %v601, 16
    %v620 = vpack.i.b16 %v619, %v618
    %v623 = vpack.i.b16 %v602, %v577
    %v624 = vshrl.u32 %v577, 16
    %v625 = vshrl.u32 %v602, 16
    %v626 = vpack.i.b16 %v625, %v624
    %627 = vrot.lane.b32.xlu0 %v341, 96
    %v628 = vpop.permute.xlu0 %627
    %629 = vrot.lane.b32.xlu0 %v344, 96
    %v630 = vpop.permute.xlu0 %629
    %631 = vrot.lane.b32.xlu0 %v346, 96
    %v632 = vpop.permute.xlu0 %631
    %633 = vrot.lane.b32.xlu0 %v348, 96
    %v634 = vpop.permute.xlu0 %633
    %v637 = vpack.i.b16 %v630, %v628
    %v639 = vshrl.u32 %v628, 16
    %v640 = vshrl.u32 %v630, 16
    %v641 = vpack.i.b16 %v640, %v639
    %v645 = vpack.i.b16 %v634, %v632
    %v647 = vshrl.u32 %v632, 16
    %v648 = vshrl.u32 %v634, 16
    %v649 = vpack.i.b16 %v648, %v647
    %v651 = vcombine.high %v637, %v366
    %v653 = vunpack.c.l.s4 1983009808
    %v654 = vunpack.c.0.s8 %v653
    %v655 = vlaneseq
    %v656 = vshrl.u32 %v655, 7
    %v657 = vsub.s32 %v654, %v656
    %v658 = vrot.slane %v637, %v657
    %v660 = vunpack.c.l.s4 1983009808
    %v661 = vunpack.c.0.s8 %v660
    %v662 = vlaneseq
    %v663 = vshrl.u32 %v662, 7
    %v664 = vsub.s32 %v661, %v663
    %v665 = vrot.slane %v651, %v664
    %v666 = vcombine.high %v645, %v366
    %v668 = vunpack.c.l.s4 1983009808
    %v669 = vunpack.c.0.s8 %v668
    %v670 = vlaneseq
    %v671 = vshrl.u32 %v670, 7
    %v672 = vsub.s32 %v669, %v671
    %v673 = vrot.slane %v645, %v672
    %v675 = vunpack.c.l.s4 1983009808
    %v676 = vunpack.c.0.s8 %v675
    %v677 = vlaneseq
    %v678 = vshrl.u32 %v677, 7
    %v679 = vsub.s32 %v676, %v678
    %v680 = vrot.slane %v666, %v679
    %v681 = vcombine.low %v658, %v673
    %v682 = vcombine.high %v658, %v673
    %v684 = vunpack.c.l.s4 1934713408
    %v685 = vunpack.c.0.s8 %v684
    %v686 = vlaneseq
    %v687 = vshrl.u32 %v686, 7
    %v688 = vsub.s32 %v685, %v687
    %v689 = vrot.slane %v681, %v688
    %v691 = vunpack.c.l.s4 1934713408
    %v692 = vunpack.c.0.s8 %v691
    %v693 = vlaneseq
    %v694 = vshrl.u32 %v693, 7
    %v695 = vsub.s32 %v692, %v694
    %v696 = vrot.slane %v682, %v695
    %v697 = vcombine.low %v665, %v680
    %v698 = vcombine.high %v665, %v680
    %v700 = vunpack.c.l.s4 1934713408
    %v701 = vunpack.c.0.s8 %v700
    %v702 = vlaneseq
    %v703 = vshrl.u32 %v702, 7
    %v704 = vsub.s32 %v701, %v703
    %v705 = vrot.slane %v697, %v704
    %v707 = vunpack.c.l.s4 1934713408
    %v708 = vunpack.c.0.s8 %v707
    %v709 = vlaneseq
    %v710 = vshrl.u32 %v709, 7
    %v711 = vsub.s32 %v708, %v710
    %v712 = vrot.slane %v698, %v711
    %v713 = vcombine.high %v689, 0
    %v714 = vcombine.high %v696, 0
    %v715 = vcombine.high %v705, 0
    %v716 = vcombine.high %v712, 0
    %v717 = vcombine.high %v641, %v369
    %v719 = vunpack.c.l.s4 1983009808
    %v720 = vunpack.c.0.s8 %v719
    %v721 = vlaneseq
    %v722 = vshrl.u32 %v721, 7
    %v723 = vsub.s32 %v720, %v722
    %v724 = vrot.slane %v641, %v723
    %v726 = vunpack.c.l.s4 1983009808
    %v727 = vunpack.c.0.s8 %v726
    %v728 = vlaneseq
    %v729 = vshrl.u32 %v728, 7
    %v730 = vsub.s32 %v727, %v729
    %v731 = vrot.slane %v717, %v730
    %v732 = vcombine.high %v649, %v369
    %v734 = vunpack.c.l.s4 1983009808
    %v735 = vunpack.c.0.s8 %v734
    %v736 = vlaneseq
    %v737 = vshrl.u32 %v736, 7
    %v738 = vsub.s32 %v735, %v737
    %v739 = vrot.slane %v649, %v738
    %v741 = vunpack.c.l.s4 1983009808
    %v742 = vunpack.c.0.s8 %v741
    %v743 = vlaneseq
    %v744 = vshrl.u32 %v743, 7
    %v745 = vsub.s32 %v742, %v744
    %v746 = vrot.slane %v732, %v745
    %v747 = vcombine.low %v724, %v739
    %v748 = vcombine.high %v724, %v739
    %v750 = vunpack.c.l.s4 1934713408
    %v751 = vunpack.c.0.s8 %v750
    %v752 = vlaneseq
    %v753 = vshrl.u32 %v752, 7
    %v754 = vsub.s32 %v751, %v753
    %v755 = vrot.slane %v747, %v754
    %v757 = vunpack.c.l.s4 1934713408
    %v758 = vunpack.c.0.s8 %v757
    %v759 = vlaneseq
    %v760 = vshrl.u32 %v759, 7
    %v761 = vsub.s32 %v758, %v760
    %v762 = vrot.slane %v748, %v761
    %v763 = vcombine.low %v731, %v746
    %v764 = vcombine.high %v731, %v746
    %v766 = vunpack.c.l.s4 1934713408
    %v767 = vunpack.c.0.s8 %v766
    %v768 = vlaneseq
    %v769 = vshrl.u32 %v768, 7
    %v770 = vsub.s32 %v767, %v769
    %v771 = vrot.slane %v763, %v770
    %v773 = vunpack.c.l.s4 1934713408
    %v774 = vunpack.c.0.s8 %v773
    %v775 = vlaneseq
    %v776 = vshrl.u32 %v775, 7
    %v777 = vsub.s32 %v774, %v776
    %v778 = vrot.slane %v764, %v777
    %v779 = vcombine.high %v755, 0
    %v780 = vcombine.high %v762, 0
    %v781 = vcombine.high %v771, 0
    %v782 = vcombine.high %v778, 0
    %v783 = vcombine.low %v689, %v705
    %v785 = vunpack.c.l.s4 1983009808
    %v786 = vunpack.c.0.s8 %v785
    %v787 = vlaneseq
    %v788 = vshrl.u32 %v787, 7
    %v789 = vsub.s32 %v786, %v788
    %v790 = vrot.slane %v783, %v789
    %v791 = vcombine.low %v696, %v712
    %v793 = vunpack.c.l.s4 1983009808
    %v794 = vunpack.c.0.s8 %v793
    %v795 = vlaneseq
    %v796 = vshrl.u32 %v795, 7
    %v797 = vsub.s32 %v794, %v796
    %v798 = vrot.slane %v791, %v797
    %v799 = vcombine.low %v790, %v798
    %v801 = vunpack.c.l.s4 1934713408
    %v802 = vunpack.c.0.s8 %v801
    %v803 = vlaneseq
    %v804 = vshrl.u32 %v803, 7
    %v805 = vsub.s32 %v802, %v804
    %v806 = vrot.slane %v799, %v805
    %v807 = vcombine.high %v806, 0
    %v808 = vcombine.low %v713, %v715
    %v810 = vunpack.c.l.s4 1983009808
    %v811 = vunpack.c.0.s8 %v810
    %v812 = vlaneseq
    %v813 = vshrl.u32 %v812, 7
    %v814 = vsub.s32 %v811, %v813
    %v815 = vrot.slane %v808, %v814
    %v816 = vcombine.low %v714, %v716
    %v818 = vunpack.c.l.s4 1983009808
    %v819 = vunpack.c.0.s8 %v818
    %v820 = vlaneseq
    %v821 = vshrl.u32 %v820, 7
    %v822 = vsub.s32 %v819, %v821
    %v823 = vrot.slane %v816, %v822
    %v824 = vcombine.low %v815, %v823
    %v826 = vunpack.c.l.s4 1934713408
    %v827 = vunpack.c.0.s8 %v826
    %v828 = vlaneseq
    %v829 = vshrl.u32 %v828, 7
    %v830 = vsub.s32 %v827, %v829
    %v831 = vrot.slane %v824, %v830
    %v832 = vcombine.high %v831, 0
    %v833 = vcombine.low %v755, %v771
    %v835 = vunpack.c.l.s4 1983009808
    %v836 = vunpack.c.0.s8 %v835
    %v837 = vlaneseq
    %v838 = vshrl.u32 %v837, 7
    %v839 = vsub.s32 %v836, %v838
    %v840 = vrot.slane %v833, %v839
    %v841 = vcombine.low %v762, %v778
    %v843 = vunpack.c.l.s4 1983009808
    %v844 = vunpack.c.0.s8 %v843
    %v845 = vlaneseq
    %v846 = vshrl.u32 %v845, 7
    %v847 = vsub.s32 %v844, %v846
    %v848 = vrot.slane %v841, %v847
    %v849 = vcombine.low %v840, %v848
    %v851 = vunpack.c.l.s4 1934713408
    %v852 = vunpack.c.0.s8 %v851
    %v853 = vlaneseq
    %v854 = vshrl.u32 %v853, 7
    %v855 = vsub.s32 %v852, %v854
    %v856 = vrot.slane %v849, %v855
    %v857 = vcombine.high %v856, 0
    %v858 = vcombine.low %v779, %v781
    %v860 = vunpack.c.l.s4 1983009808
    %v861 = vunpack.c.0.s8 %v860
    %v862 = vlaneseq
    %v863 = vshrl.u32 %v862, 7
    %v864 = vsub.s32 %v861, %v863
    %v865 = vrot.slane %v858, %v864
    %v866 = vcombine.low %v780, %v782
    %v868 = vunpack.c.l.s4 1983009808
    %v869 = vunpack.c.0.s8 %v868
    %v870 = vlaneseq
    %v871 = vshrl.u32 %v870, 7
    %v872 = vsub.s32 %v869, %v871
    %v873 = vrot.slane %v866, %v872
    %v874 = vcombine.low %v865, %v873
    %v876 = vunpack.c.l.s4 1934713408
    %v877 = vunpack.c.0.s8 %v876
    %v878 = vlaneseq
    %v879 = vshrl.u32 %v878, 7
    %v880 = vsub.s32 %v877, %v879
    %v881 = vrot.slane %v874, %v880
    %v882 = vcombine.high %v881, 0
    %v885 = vpack.i.b16 %v831, %v806
    %v886 = vshrl.u32 %v806, 16
    %v887 = vshrl.u32 %v831, 16
    %v888 = vpack.i.b16 %v887, %v886
    %v891 = vpack.i.b16 %v832, %v807
    %v892 = vshrl.u32 %v807, 16
    %v893 = vshrl.u32 %v832, 16
    %v894 = vpack.i.b16 %v893, %v892
    %v897 = vpack.i.b16 %v881, %v856
    %v898 = vshrl.u32 %v856, 16
    %v899 = vshrl.u32 %v881, 16
    %v900 = vpack.i.b16 %v899, %v898
    %v903 = vpack.i.b16 %v882, %v857
    %v904 = vshrl.u32 %v857, 16
    %v905 = vshrl.u32 %v882, 16
    %v906 = vpack.i.b16 %v905, %v904
    %907 = vrot.lane.b32.xlu0 %v341, 64
    %v908 = vpop.permute.xlu0 %907
    %909 = vrot.lane.b32.xlu0 %v344, 64
    %v910 = vpop.permute.xlu0 %909
    %911 = vrot.lane.b32.xlu0 %v346, 64
    %v912 = vpop.permute.xlu0 %911
    %913 = vrot.lane.b32.xlu0 %v348, 64
    %v914 = vpop.permute.xlu0 %913
    %v917 = vpack.i.b16 %v910, %v908
    %v919 = vshrl.u32 %v908, 16
    %v920 = vshrl.u32 %v910, 16
    %v921 = vpack.i.b16 %v920, %v919
    %v925 = vpack.i.b16 %v914, %v912
    %v927 = vshrl.u32 %v912, 16
    %v928 = vshrl.u32 %v914, 16
    %v929 = vpack.i.b16 %v928, %v927
    %v931 = vcombine.high %v917, %v366
    %v933 = vunpack.c.l.s4 1983009808
    %v934 = vunpack.c.0.s8 %v933
    %v935 = vlaneseq
    %v936 = vshrl.u32 %v935, 7
    %v937 = vsub.s32 %v934, %v936
    %v938 = vrot.slane %v917, %v937
    %v940 = vunpack.c.l.s4 1983009808
    %v941 = vunpack.c.0.s8 %v940
    %v942 = vlaneseq
    %v943 = vshrl.u32 %v942, 7
    %v944 = vsub.s32 %v941, %v943
    %v945 = vrot.slane %v931, %v944
    %v946 = vcombine.high %v925, %v366
    %v948 = vunpack.c.l.s4 1983009808
    %v949 = vunpack.c.0.s8 %v948
    %v950 = vlaneseq
    %v951 = vshrl.u32 %v950, 7
    %v952 = vsub.s32 %v949, %v951
    %v953 = vrot.slane %v925, %v952
    %v955 = vunpack.c.l.s4 1983009808
    %v956 = vunpack.c.0.s8 %v955
    %v957 = vlaneseq
    %v958 = vshrl.u32 %v957, 7
    %v959 = vsub.s32 %v956, %v958
    %v960 = vrot.slane %v946, %v959
    %v961 = vcombine.low %v938, %v953
    %v962 = vcombine.high %v938, %v953
    %v964 = vunpack.c.l.s4 1934713408
    %v965 = vunpack.c.0.s8 %v964
    %v966 = vlaneseq
    %v967 = vshrl.u32 %v966, 7
    %v968 = vsub.s32 %v965, %v967
    %v969 = vrot.slane %v961, %v968
    %v971 = vunpack.c.l.s4 1934713408
    %v972 = vunpack.c.0.s8 %v971
    %v973 = vlaneseq
    %v974 = vshrl.u32 %v973, 7
    %v975 = vsub.s32 %v972, %v974
    %v976 = vrot.slane %v962, %v975
    %v977 = vcombine.low %v945, %v960
    %v978 = vcombine.high %v945, %v960
    %v980 = vunpack.c.l.s4 1934713408
    %v981 = vunpack.c.0.s8 %v980
    %v982 = vlaneseq
    %v983 = vshrl.u32 %v982, 7
    %v984 = vsub.s32 %v981, %v983
    %v985 = vrot.slane %v977, %v984
    %v987 = vunpack.c.l.s4 1934713408
    %v988 = vunpack.c.0.s8 %v987
    %v989 = vlaneseq
    %v990 = vshrl.u32 %v989, 7
    %v991 = vsub.s32 %v988, %v990
    %v992 = vrot.slane %v978, %v991
    %v993 = vcombine.high %v969, 0
    %v994 = vcombine.high %v976, 0
    %v995 = vcombine.high %v985, 0
    %v996 = vcombine.high %v992, 0
    %v997 = vcombine.high %v921, %v369
    %v999 = vunpack.c.l.s4 1983009808
    %v1000 = vunpack.c.0.s8 %v999
    %v1001 = vlaneseq
    %v1002 = vshrl.u32 %v1001, 7
    %v1003 = vsub.s32 %v1000, %v1002
    %v1004 = vrot.slane %v921, %v1003
    %v1006 = vunpack.c.l.s4 1983009808
    %v1007 = vunpack.c.0.s8 %v1006
    %v1008 = vlaneseq
    %v1009 = vshrl.u32 %v1008, 7
    %v1010 = vsub.s32 %v1007, %v1009
    %v1011 = vrot.slane %v997, %v1010
    %v1012 = vcombine.high %v929, %v369
    %v1014 = vunpack.c.l.s4 1983009808
    %v1015 = vunpack.c.0.s8 %v1014
    %v1016 = vlaneseq
    %v1017 = vshrl.u32 %v1016, 7
    %v1018 = vsub.s32 %v1015, %v1017
    %v1019 = vrot.slane %v929, %v1018
    %v1021 = vunpack.c.l.s4 1983009808
    %v1022 = vunpack.c.0.s8 %v1021
    %v1023 = vlaneseq
    %v1024 = vshrl.u32 %v1023, 7
    %v1025 = vsub.s32 %v1022, %v1024
    %v1026 = vrot.slane %v1012, %v1025
    %v1027 = vcombine.low %v1004, %v1019
    %v1028 = vcombine.high %v1004, %v1019
    %v1030 = vunpack.c.l.s4 1934713408
    %v1031 = vunpack.c.0.s8 %v1030
    %v1032 = vlaneseq
    %v1033 = vshrl.u32 %v1032, 7
    %v1034 = vsub.s32 %v1031, %v1033
    %v1035 = vrot.slane %v1027, %v1034
    %v1037 = vunpack.c.l.s4 1934713408
    %v1038 = vunpack.c.0.s8 %v1037
    %v1039 = vlaneseq
    %v1040 = vshrl.u32 %v1039, 7
    %v1041 = vsub.s32 %v1038, %v1040
    %v1042 = vrot.slane %v1028, %v1041
    %v1043 = vcombine.low %v1011, %v1026
    %v1044 = vcombine.high %v1011, %v1026
    %v1046 = vunpack.c.l.s4 1934713408
    %v1047 = vunpack.c.0.s8 %v1046
    %v1048 = vlaneseq
    %v1049 = vshrl.u32 %v1048, 7
    %v1050 = vsub.s32 %v1047, %v1049
    %v1051 = vrot.slane %v1043, %v1050
    %v1053 = vunpack.c.l.s4 1934713408
    %v1054 = vunpack.c.0.s8 %v1053
    %v1055 = vlaneseq
    %v1056 = vshrl.u32 %v1055, 7
    %v1057 = vsub.s32 %v1054, %v1056
    %v1058 = vrot.slane %v1044, %v1057
    %v1059 = vcombine.high %v1035, 0
    %v1060 = vcombine.high %v1042, 0
    %v1061 = vcombine.high %v1051, 0
    %v1062 = vcombine.high %v1058, 0
    %v1063 = vcombine.low %v969, %v985
    %v1065 = vunpack.c.l.s4 1983009808
    %v1066 = vunpack.c.0.s8 %v1065
    %v1067 = vlaneseq
    %v1068 = vshrl.u32 %v1067, 7
    %v1069 = vsub.s32 %v1066, %v1068
    %v1070 = vrot.slane %v1063, %v1069
    %v1071 = vcombine.low %v976, %v992
    %v1073 = vunpack.c.l.s4 1983009808
    %v1074 = vunpack.c.0.s8 %v1073
    %v1075 = vlaneseq
    %v1076 = vshrl.u32 %v1075, 7
    %v1077 = vsub.s32 %v1074, %v1076
    %v1078 = vrot.slane %v1071, %v1077
    %v1079 = vcombine.low %v1070, %v1078
    %v1081 = vunpack.c.l.s4 1934713408
    %v1082 = vunpack.c.0.s8 %v1081
    %v1083 = vlaneseq
    %v1084 = vshrl.u32 %v1083, 7
    %v1085 = vsub.s32 %v1082, %v1084
    %v1086 = vrot.slane %v1079, %v1085
    %v1087 = vcombine.high %v1086, 0
    %v1088 = vcombine.low %v993, %v995
    %v1090 = vunpack.c.l.s4 1983009808
    %v1091 = vunpack.c.0.s8 %v1090
    %v1092 = vlaneseq
    %v1093 = vshrl.u32 %v1092, 7
    %v1094 = vsub.s32 %v1091, %v1093
    %v1095 = vrot.slane %v1088, %v1094
    %v1096 = vcombine.low %v994, %v996
    %v1098 = vunpack.c.l.s4 1983009808
    %v1099 = vunpack.c.0.s8 %v1098
    %v1100 = vlaneseq
    %v1101 = vshrl.u32 %v1100, 7
    %v1102 = vsub.s32 %v1099, %v1101
    %v1103 = vrot.slane %v1096, %v1102
    %v1104 = vcombine.low %v1095, %v1103
    %v1106 = vunpack.c.l.s4 1934713408
    %v1107 = vunpack.c.0.s8 %v1106
    %v1108 = vlaneseq
    %v1109 = vshrl.u32 %v1108, 7
    %v1110 = vsub.s32 %v1107, %v1109
    %v1111 = vrot.slane %v1104, %v1110
    %v1112 = vcombine.high %v1111, 0
    %v1113 = vcombine.low %v1035, %v1051
    %v1115 = vunpack.c.l.s4 1983009808
    %v1116 = vunpack.c.0.s8 %v1115
    %v1117 = vlaneseq
    %v1118 = vshrl.u32 %v1117, 7
    %v1119 = vsub.s32 %v1116, %v1118
    %v1120 = vrot.slane %v1113, %v1119
    %v1121 = vcombine.low %v1042, %v1058
    %v1123 = vunpack.c.l.s4 1983009808
    %v1124 = vunpack.c.0.s8 %v1123
    %v1125 = vlaneseq
    %v1126 = vshrl.u32 %v1125, 7
    %v1127 = vsub.s32 %v1124, %v1126
    %v1128 = vrot.slane %v1121, %v1127
    %v1129 = vcombine.low %v1120, %v1128
    %v1131 = vunpack.c.l.s4 1934713408
    %v1132 = vunpack.c.0.s8 %v1131
    %v1133 = vlaneseq
    %v1134 = vshrl.u32 %v1133, 7
    %v1135 = vsub.s32 %v1132, %v1134
    %v1136 = vrot.slane %v1129, %v1135
    %v1137 = vcombine.high %v1136, 0
    %v1138 = vcombine.low %v1059, %v1061
    %v1140 = vunpack.c.l.s4 1983009808
    %v1141 = vunpack.c.0.s8 %v1140
    %v1142 = vlaneseq
    %v1143 = vshrl.u32 %v1142, 7
    %v1144 = vsub.s32 %v1141, %v1143
    %v1145 = vrot.slane %v1138, %v1144
    %v1146 = vcombine.low %v1060, %v1062
    %v1148 = vunpack.c.l.s4 1983009808
    %v1149 = vunpack.c.0.s8 %v1148
    %v1150 = vlaneseq
    %v1151 = vshrl.u32 %v1150, 7
    %v1152 = vsub.s32 %v1149, %v1151
    %v1153 = vrot.slane %v1146, %v1152
    %v1154 = vcombine.low %v1145, %v1153
    %v1156 = vunpack.c.l.s4 1934713408
    %v1157 = vunpack.c.0.s8 %v1156
    %v1158 = vlaneseq
    %v1159 = vshrl.u32 %v1158, 7
    %v1160 = vsub.s32 %v1157, %v1159
    %v1161 = vrot.slane %v1154, %v1160
    %v1162 = vcombine.high %v1161, 0
    %v1165 = vpack.i.b16 %v1111, %v1086
    %v1166 = vshrl.u32 %v1086, 16
    %v1167 = vshrl.u32 %v1111, 16
    %v1168 = vpack.i.b16 %v1167, %v1166
    %v1171 = vpack.i.b16 %v1112, %v1087
    %v1172 = vshrl.u32 %v1087, 16
    %v1173 = vshrl.u32 %v1112, 16
    %v1174 = vpack.i.b16 %v1173, %v1172
    %v1177 = vpack.i.b16 %v1161, %v1136
    %v1178 = vshrl.u32 %v1136, 16
    %v1179 = vshrl.u32 %v1161, 16
    %v1180 = vpack.i.b16 %v1179, %v1178
    %v1183 = vpack.i.b16 %v1162, %v1137
    %v1184 = vshrl.u32 %v1137, 16
    %v1185 = vshrl.u32 %v1162, 16
    %v1186 = vpack.i.b16 %v1185, %v1184
    %vm1187 = vcmask 64512
    %v1189 = vsel %vm1187, %v605, 0
    %v1192 = vsel %vm1187, %v885, 0
    %1194 = vmatprep.subr.bf16.mxu0 0
    %1195 = vmatpush1.bf16.xpose.msra.mxu0 0
    %1196 = vmatprep.subr.bf16.mxu0 0
    %1197 = vmatpush1.bf16.xpose.msra.mxu0 0
    %1198 = vmatprep.subr.bf16.mxu0 0
    %1199 = vmatpush1.bf16.xpose.msra.mxu0 0
    %1200 = vmatprep.subr.bf16.mxu0 0
    %1201 = vmatpush1.bf16.xpose.msra.mxu0 0
    %1202 = vmatprep.subr.bf16.mxu0 0
    %1203 = vmatpush1.bf16.xpose.msra.mxu0 0
    %1204 = vmatprep.subr.bf16.mxu0 0
    %1205 = vmatpush1.bf16.xpose.msra.mxu0 0
    %1206 = vmatprep.subr.bf16.mxu0 0
    %1207 = vmatpush1.bf16.xpose.msra.mxu0 0
    %1208 = vmatprep.subr.bf16.mxu0 0
    %1209 = vmatpush1.bf16.xpose.msra.mxu0 %v1192
    %1210 = vmatprep.subr.bf16.mxu0 0
    %1211 = vmatpush2.bf16.xpose.msra.mxu0 0
    %1212 = vmatprep.subr.bf16.mxu0 0
    %1213 = vmatpush2.bf16.xpose.msra.mxu0 0
    %1214 = vmatprep.subr.bf16.mxu0 0
    %1215 = vmatpush2.bf16.xpose.msra.mxu0 0
    %1216 = vmatprep.subr.bf16.mxu0 0
    %1217 = vmatpush2.bf16.xpose.msra.mxu0 0
    %1218 = vmatprep.subr.bf16.mxu0 0
    %1219 = vmatpush2.bf16.xpose.msra.mxu0 0
    %1220 = vmatprep.subr.bf16.mxu0 0
    %1221 = vmatpush2.bf16.xpose.msra.mxu0 0
    %1222 = vmatprep.subr.bf16.mxu0 0
    %1223 = vmatpush2.bf16.xpose.msra.mxu0 0
    %1224 = vmatprep.subr.bf16.mxu0 0
    %1225 = vmatpush2.bf16.xpose.msra.mxu0 0
    %1226 = vmatprep.mubr.bf16.mxu0 0
    %1227 = vmatmul.mubr.bf16.gmra.mxu0 %v1189
    %v1228 = vpop.f32.mrf.mxu0
    %v1229 = vadd.f32 0.0, %v1228
    %v1230 = vpop.f32.mrf.mxu0
    %v1231 = vpop.f32.mrf.mxu0
    %v1232 = vpop.f32.mrf.mxu0
    %1233 = vdwg.mxu0
    %v1235 = vsel %vm1187, %v608, 0
    %v1238 = vsel %vm1187, %v888, 0
    %1240 = vmatprep.subr.bf16.mxu0 0
    %1241 = vmatpush1.bf16.xpose.msra.mxu0 0
    %1242 = vmatprep.subr.bf16.mxu0 0
    %1243 = vmatpush1.bf16.xpose.msra.mxu0 0
    %1244 = vmatprep.subr.bf16.mxu0 0
    %1245 = vmatpush1.bf16.xpose.msra.mxu0 0
    %1246 = vmatprep.subr.bf16.mxu0 0
    %1247 = vmatpush1.bf16.xpose.msra.mxu0 0
    %1248 = vmatprep.subr.bf16.mxu0 0
    %1249 = vmatpush1.bf16.xpose.msra.mxu0 0
    %1250 = vmatprep.subr.bf16.mxu0 0
    %1251 = vmatpush1.bf16.xpose.msra.mxu0 0
    %1252 = vmatprep.subr.bf16.mxu0 0
    %1253 = vmatpush1.bf16.xpose.msra.mxu0 0
    %1254 = vmatprep.subr.bf16.mxu0 0
    %1255 = vmatpush1.bf16.xpose.msra.mxu0 %v1238
    %1256 = vmatprep.subr.bf16.mxu0 0
    %1257 = vmatpush2.bf16.xpose.msra.mxu0 0
    %1258 = vmatprep.subr.bf16.mxu0 0
    %1259 = vmatpush2.bf16.xpose.msra.mxu0 0
    %1260 = vmatprep.subr.bf16.mxu0 0
    %1261 = vmatpush2.bf16.xpose.msra.mxu0 0
    %1262 = vmatprep.subr.bf16.mxu0 0
    %1263 = vmatpush2.bf16.xpose.msra.mxu0 0
    %1264 = vmatprep.subr.bf16.mxu0 0
    %1265 = vmatpush2.bf16.xpose.msra.mxu0 0
    %1266 = vmatprep.subr.bf16.mxu0 0
    %1267 = vmatpush2.bf16.xpose.msra.mxu0 0
    %1268 = vmatprep.subr.bf16.mxu0 0
    %1269 = vmatpush2.bf16.xpose.msra.mxu0 0
    %1270 = vmatprep.subr.bf16.mxu0 0
    %1271 = vmatpush2.bf16.xpose.msra.mxu0 0
    %1272 = vmatprep.mubr.bf16.mxu0 0
    %1273 = vmatmul.mubr.bf16.gmra.mxu0 %v1235
    %v1274 = vpop.f32.mrf.mxu0
    %v1275 = vadd.f32 0.0, %v1274
    %v1276 = vpop.f32.mrf.mxu0
    %v1277 = vpop.f32.mrf.mxu0
    %v1278 = vpop.f32.mrf.mxu0
    %1279 = vdwg.mxu0
    %v1281 = vsel %vm1187, %v611, 0
    %v1284 = vsel %vm1187, %v891, 0
    %1286 = vmatprep.subr.bf16.mxu0 0
    %1287 = vmatpush1.bf16.xpose.msra.mxu0 0
    %1288 = vmatprep.subr.bf16.mxu0 0
    %1289 = vmatpush1.bf16.xpose.msra.mxu0 0
    %1290 = vmatprep.subr.bf16.mxu0 0
    %1291 = vmatpush1.bf16.xpose.msra.mxu0 0
    %1292 = vmatprep.subr.bf16.mxu0 0
    %1293 = vmatpush1.bf16.xpose.msra.mxu0 0
    %1294 = vmatprep.subr.bf16.mxu0 0
    %1295 = vmatpush1.bf16.xpose.msra.mxu0 0
    %1296 = vmatprep.subr.bf16.mxu0 0
    %1297 = vmatpush1.bf16.xpose.msra.mxu0 0
    %1298 = vmatprep.subr.bf16.mxu0 0
    %1299 = vmatpush1.bf16.xpose.msra.mxu0 0
    %1300 = vmatprep.subr.bf16.mxu0 0
    %1301 = vmatpush1.bf16.xpose.msra.mxu0 %v1284
    %1302 = vmatprep.subr.bf16.mxu0 0
    %1303 = vmatpush2.bf16.xpose.msra.mxu0 0
    %1304 = vmatprep.subr.bf16.mxu0 0
    %1305 = vmatpush2.bf16.xpose.msra.mxu0 0
    %1306 = vmatprep.subr.bf16.mxu0 0
    %1307 = vmatpush2.bf16.xpose.msra.mxu0 0
    %1308 = vmatprep.subr.bf16.mxu0 0
    %1309 = vmatpush2.bf16.xpose.msra.mxu0 0
    %1310 = vmatprep.subr.bf16.mxu0 0
    %1311 = vmatpush2.bf16.xpose.msra.mxu0 0
    %1312 = vmatprep.subr.bf16.mxu0 0
    %1313 = vmatpush2.bf16.xpose.msra.mxu0 0
    %1314 = vmatprep.subr.bf16.mxu0 0
    %1315 = vmatpush2.bf16.xpose.msra.mxu0 0
    %1316 = vmatprep.subr.bf16.mxu0 0
    %1317 = vmatpush2.bf16.xpose.msra.mxu0 0
    %1318 = vmatprep.mubr.bf16.mxu0 0
    %1319 = vmatmul.mubr.bf16.gmra.mxu0 %v1281
    %v1320 = vpop.f32.mrf.mxu0
    %v1321 = vadd.f32 0.0, %v1320
    %v1322 = vpop.f32.mrf.mxu0
    %v1323 = vpop.f32.mrf.mxu0
    %v1324 = vpop.f32.mrf.mxu0
    %1325 = vdwg.mxu0
    %v1327 = vsel %vm1187, %v614, 0
    %v1330 = vsel %vm1187, %v894, 0
    %1332 = vmatprep.subr.bf16.mxu0 0
    %1333 = vmatpush1.bf16.xpose.msra.mxu0 0
    %1334 = vmatprep.subr.bf16.mxu0 0
    %1335 = vmatpush1.bf16.xpose.msra.mxu0 0
    %1336 = vmatprep.subr.bf16.mxu0 0
    %1337 = vmatpush1.bf16.xpose.msra.mxu0 0
    %1338 = vmatprep.subr.bf16.mxu0 0
    %1339 = vmatpush1.bf16.xpose.msra.mxu0 0
    %1340 = vmatprep.subr.bf16.mxu0 0
    %1341 = vmatpush1.bf16.xpose.msra.mxu0 0
    %1342 = vmatprep.subr.bf16.mxu0 0
    %1343 = vmatpush1.bf16.xpose.msra.mxu0 0
    %1344 = vmatprep.subr.bf16.mxu0 0
    %1345 = vmatpush1.bf16.xpose.msra.mxu0 0
    %1346 = vmatprep.subr.bf16.mxu0 0
    %1347 = vmatpush1.bf16.xpose.msra.mxu0 %v1330
    %1348 = vmatprep.subr.bf16.mxu0 0
    %1349 = vmatpush2.bf16.xpose.msra.mxu0 0
    %1350 = vmatprep.subr.bf16.mxu0 0
    %1351 = vmatpush2.bf16.xpose.msra.mxu0 0
    %1352 = vmatprep.subr.bf16.mxu0 0
    %1353 = vmatpush2.bf16.xpose.msra.mxu0 0
    %1354 = vmatprep.subr.bf16.mxu0 0
    %1355 = vmatpush2.bf16.xpose.msra.mxu0 0
    %1356 = vmatprep.subr.bf16.mxu0 0
    %1357 = vmatpush2.bf16.xpose.msra.mxu0 0
    %1358 = vmatprep.subr.bf16.mxu0 0
    %1359 = vmatpush2.bf16.xpose.msra.mxu0 0
    %1360 = vmatprep.subr.bf16.mxu0 0
    %1361 = vmatpush2.bf16.xpose.msra.mxu0 0
    %1362 = vmatprep.subr.bf16.mxu0 0
    %1363 = vmatpush2.bf16.xpose.msra.mxu0 0
    %1364 = vmatprep.mubr.bf16.mxu0 0
    %1365 = vmatmul.mubr.bf16.gmra.mxu0 %v1327
    %v1366 = vpop.f32.mrf.mxu0
    %v1367 = vadd.f32 0.0, %v1366
    %v1368 = vpop.f32.mrf.mxu0
    %v1369 = vpop.f32.mrf.mxu0
    %v1370 = vpop.f32.mrf.mxu0
    %1371 = vdwg.mxu0
    %v1373 = vsel %vm1187, %v617, 0
    %v1376 = vsel %vm1187, %v897, 0
    %1378 = vmatprep.subr.bf16.mxu0 0
    %1379 = vmatpush1.bf16.xpose.msra.mxu0 0
    %1380 = vmatprep.subr.bf16.mxu0 0
    %1381 = vmatpush1.bf16.xpose.msra.mxu0 0
    %1382 = vmatprep.subr.bf16.mxu0 0
    %1383 = vmatpush1.bf16.xpose.msra.mxu0 0
    %1384 = vmatprep.subr.bf16.mxu0 0
    %1385 = vmatpush1.bf16.xpose.msra.mxu0 0
    %1386 = vmatprep.subr.bf16.mxu0 0
    %1387 = vmatpush1.bf16.xpose.msra.mxu0 0
    %1388 = vmatprep.subr.bf16.mxu0 0
    %1389 = vmatpush1.bf16.xpose.msra.mxu0 0
    %1390 = vmatprep.subr.bf16.mxu0 0
    %1391 = vmatpush1.bf16.xpose.msra.mxu0 0
    %1392 = vmatprep.subr.bf16.mxu0 0
    %1393 = vmatpush1.bf16.xpose.msra.mxu0 %v1376
    %1394 = vmatprep.subr.bf16.mxu0 0
    %1395 = vmatpush2.bf16.xpose.msra.mxu0 0
    %1396 = vmatprep.subr.bf16.mxu0 0
    %1397 = vmatpush2.bf16.xpose.msra.mxu0 0
    %1398 = vmatprep.subr.bf16.mxu0 0
    %1399 = vmatpush2.bf16.xpose.msra.mxu0 0
    %1400 = vmatprep.subr.bf16.mxu0 0
    %1401 = vmatpush2.bf16.xpose.msra.mxu0 0
    %1402 = vmatprep.subr.bf16.mxu0 0
    %1403 = vmatpush2.bf16.xpose.msra.mxu0 0
    %1404 = vmatprep.subr.bf16.mxu0 0
    %1405 = vmatpush2.bf16.xpose.msra.mxu0 0
    %1406 = vmatprep.subr.bf16.mxu0 0
    %1407 = vmatpush2.bf16.xpose.msra.mxu0 0
    %1408 = vmatprep.subr.bf16.mxu0 0
    %1409 = vmatpush2.bf16.xpose.msra.mxu0 0
    %1410 = vmatprep.mubr.bf16.mxu0 0
    %1411 = vmatmul.mubr.bf16.gmra.mxu0 %v1373
    %v1412 = vpop.f32.mrf.mxu0
    %v1413 = vadd.f32 0.0, %v1412
    %v1414 = vpop.f32.mrf.mxu0
    %v1415 = vpop.f32.mrf.mxu0
    %v1416 = vpop.f32.mrf.mxu0
    %1417 = vdwg.mxu0
    %v1419 = vsel %vm1187, %v620, 0
    %v1422 = vsel %vm1187, %v900, 0
    %1424 = vmatprep.subr.bf16.mxu0 0
    %1425 = vmatpush1.bf16.xpose.msra.mxu0 0
    %1426 = vmatprep.subr.bf16.mxu0 0
    %1427 = vmatpush1.bf16.xpose.msra.mxu0 0
    %1428 = vmatprep.subr.bf16.mxu0 0
    %1429 = vmatpush1.bf16.xpose.msra.mxu0 0
    %1430 = vmatprep.subr.bf16.mxu0 0
    %1431 = vmatpush1.bf16.xpose.msra.mxu0 0
    %1432 = vmatprep.subr.bf16.mxu0 0
    %1433 = vmatpush1.bf16.xpose.msra.mxu0 0
    %1434 = vmatprep.subr.bf16.mxu0 0
    %1435 = vmatpush1.bf16.xpose.msra.mxu0 0
    %1436 = vmatprep.subr.bf16.mxu0 0
    %1437 = vmatpush1.bf16.xpose.msra.mxu0 0
    %1438 = vmatprep.subr.bf16.mxu0 0
    %1439 = vmatpush1.bf16.xpose.msra.mxu0 %v1422
    %1440 = vmatprep.subr.bf16.mxu0 0
    %1441 = vmatpush2.bf16.xpose.msra.mxu0 0
    %1442 = vmatprep.subr.bf16.mxu0 0
    %1443 = vmatpush2.bf16.xpose.msra.mxu0 0
    %1444 = vmatprep.subr.bf16.mxu0 0
    %1445 = vmatpush2.bf16.xpose.msra.mxu0 0
    %1446 = vmatprep.subr.bf16.mxu0 0
    %1447 = vmatpush2.bf16.xpose.msra.mxu0 0
    %1448 = vmatprep.subr.bf16.mxu0 0
    %1449 = vmatpush2.bf16.xpose.msra.mxu0 0
    %1450 = vmatprep.subr.bf16.mxu0 0
    %1451 = vmatpush2.bf16.xpose.msra.mxu0 0
    %1452 = vmatprep.subr.bf16.mxu0 0
    %1453 = vmatpush2.bf16.xpose.msra.mxu0 0
    %1454 = vmatprep.subr.bf16.mxu0 0
    %1455 = vmatpush2.bf16.xpose.msra.mxu0 0
    %1456 = vmatprep.mubr.bf16.mxu0 0
    %1457 = vmatmul.mubr.bf16.gmra.mxu0 %v1419
    %v1458 = vpop.f32.mrf.mxu0
    %v1459 = vadd.f32 0.0, %v1458
    %v1460 = vpop.f32.mrf.mxu0
    %v1461 = vpop.f32.mrf.mxu0
    %v1462 = vpop.f32.mrf.mxu0
    %1463 = vdwg.mxu0
    %v1465 = vsel %vm1187, %v623, 0
    %v1468 = vsel %vm1187, %v903, 0
    %1470 = vmatprep.subr.bf16.mxu0 0
    %1471 = vmatpush1.bf16.xpose.msra.mxu0 0
    %1472 = vmatprep.subr.bf16.mxu0 0
    %1473 = vmatpush1.bf16.xpose.msra.mxu0 0
    %1474 = vmatprep.subr.bf16.mxu0 0
    %1475 = vmatpush1.bf16.xpose.msra.mxu0 0
    %1476 = vmatprep.subr.bf16.mxu0 0
    %1477 = vmatpush1.bf16.xpose.msra.mxu0 0
    %1478 = vmatprep.subr.bf16.mxu0 0
    %1479 = vmatpush1.bf16.xpose.msra.mxu0 0
    %1480 = vmatprep.subr.bf16.mxu0 0
    %1481 = vmatpush1.bf16.xpose.msra.mxu0 0
    %1482 = vmatprep.subr.bf16.mxu0 0
    %1483 = vmatpush1.bf16.xpose.msra.mxu0 0
    %1484 = vmatprep.subr.bf16.mxu0 0
    %1485 = vmatpush1.bf16.xpose.msra.mxu0 %v1468
    %1486 = vmatprep.subr.bf16.mxu0 0
    %1487 = vmatpush2.bf16.xpose.msra.mxu0 0
    %1488 = vmatprep.subr.bf16.mxu0 0
    %1489 = vmatpush2.bf16.xpose.msra.mxu0 0
    %1490 = vmatprep.subr.bf16.mxu0 0
    %1491 = vmatpush2.bf16.xpose.msra.mxu0 0
    %1492 = vmatprep.subr.bf16.mxu0 0
    %1493 = vmatpush2.bf16.xpose.msra.mxu0 0
    %1494 = vmatprep.subr.bf16.mxu0 0
    %1495 = vmatpush2.bf16.xpose.msra.mxu0 0
    %1496 = vmatprep.subr.bf16.mxu0 0
    %1497 = vmatpush2.bf16.xpose.msra.mxu0 0
    %1498 = vmatprep.subr.bf16.mxu0 0
    %1499 = vmatpush2.bf16.xpose.msra.mxu0 0
    %1500 = vmatprep.subr.bf16.mxu0 0
    %1501 = vmatpush2.bf16.xpose.msra.mxu0 0
    %1502 = vmatprep.mubr.bf16.mxu0 0
    %1503 = vmatmul.mubr.bf16.gmra.mxu0 %v1465
    %v1504 = vpop.f32.mrf.mxu0
    %v1505 = vadd.f32 0.0, %v1504
    %v1506 = vpop.f32.mrf.mxu0
    %v1507 = vpop.f32.mrf.mxu0
    %v1508 = vpop.f32.mrf.mxu0
    %1509 = vdwg.mxu0
    %v1511 = vsel %vm1187, %v626, 0
    %v1514 = vsel %vm1187, %v906, 0
    %1516 = vmatprep.subr.bf16.mxu0 0
    %1517 = vmatpush1.bf16.xpose.msra.mxu0 0
    %1518 = vmatprep.subr.bf16.mxu0 0
    %1519 = vmatpush1.bf16.xpose.msra.mxu0 0
    %1520 = vmatprep.subr.bf16.mxu0 0
    %1521 = vmatpush1.bf16.xpose.msra.mxu0 0
    %1522 = vmatprep.subr.bf16.mxu0 0
    %1523 = vmatpush1.bf16.xpose.msra.mxu0 0
    %1524 = vmatprep.subr.bf16.mxu0 0
    %1525 = vmatpush1.bf16.xpose.msra.mxu0 0
    %1526 = vmatprep.subr.bf16.mxu0 0
    %1527 = vmatpush1.bf16.xpose.msra.mxu0 0
    %1528 = vmatprep.subr.bf16.mxu0 0
    %1529 = vmatpush1.bf16.xpose.msra.mxu0 0
    %1530 = vmatprep.subr.bf16.mxu0 0
    %1531 = vmatpush1.bf16.xpose.msra.mxu0 %v1514
    %1532 = vmatprep.subr.bf16.mxu0 0
    %1533 = vmatpush2.bf16.xpose.msra.mxu0 0
    %1534 = vmatprep.subr.bf16.mxu0 0
    %1535 = vmatpush2.bf16.xpose.msra.mxu0 0
    %1536 = vmatprep.subr.bf16.mxu0 0
    %1537 = vmatpush2.bf16.xpose.msra.mxu0 0
    %1538 = vmatprep.subr.bf16.mxu0 0
    %1539 = vmatpush2.bf16.xpose.msra.mxu0 0
    %1540 = vmatprep.subr.bf16.mxu0 0
    %1541 = vmatpush2.bf16.xpose.msra.mxu0 0
    %1542 = vmatprep.subr.bf16.mxu0 0
    %1543 = vmatpush2.bf16.xpose.msra.mxu0 0
    %1544 = vmatprep.subr.bf16.mxu0 0
    %1545 = vmatpush2.bf16.xpose.msra.mxu0 0
    %1546 = vmatprep.subr.bf16.mxu0 0
    %1547 = vmatpush2.bf16.xpose.msra.mxu0 0
    %1548 = vmatprep.mubr.bf16.mxu0 0
    %1549 = vmatmul.mubr.bf16.gmra.mxu0 %v1511
    %v1550 = vpop.f32.mrf.mxu0
    %v1551 = vadd.f32 0.0, %v1550
    %v1552 = vpop.f32.mrf.mxu0
    %v1553 = vpop.f32.mrf.mxu0
    %v1554 = vpop.f32.mrf.mxu0
    %1555 = vdwg.mxu0
    %v1556 = vsel %vm1187, %v1229, -inf
    %1557 = vmax.xlane.f32.xlu0 %v1556
    %v1558 = vpop.xlane.xlu0 %1557
    %v1559 = vsel %vm1187, %v1275, -inf
    %1560 = vmax.xlane.f32.xlu0 %v1559
    %v1561 = vpop.xlane.xlu0 %1560
    %v1562 = vsel %vm1187, %v1321, -inf
    %1563 = vmax.xlane.f32.xlu0 %v1562
    %v1564 = vpop.xlane.xlu0 %1563
    %v1565 = vsel %vm1187, %v1367, -inf
    %1566 = vmax.xlane.f32.xlu0 %v1565
    %v1567 = vpop.xlane.xlu0 %1566
    %v1568 = vsel %vm1187, %v1413, -inf
    %1569 = vmax.xlane.f32.xlu0 %v1568
    %v1570 = vpop.xlane.xlu0 %1569
    %v1571 = vsel %vm1187, %v1459, -inf
    %1572 = vmax.xlane.f32.xlu0 %v1571
    %v1573 = vpop.xlane.xlu0 %1572
    %v1574 = vsel %vm1187, %v1505, -inf
    %1575 = vmax.xlane.f32.xlu0 %v1574
    %v1576 = vpop.xlane.xlu0 %1575
    %v1577 = vsel %vm1187, %v1551, -inf
    %1578 = vmax.xlane.f32.xlu0 %v1577
    %v1579 = vpop.xlane.xlu0 %1578
    %v1580 = vsub.f32 %v1229, %v1558
    %v1581 = vsub.f32 %v1275, %v1561
    %v1582 = vsub.f32 %v1321, %v1564
    %v1583 = vsub.f32 %v1367, %v1567
    %v1584 = vsub.f32 %v1413, %v1570
    %v1585 = vsub.f32 %v1459, %v1573
    %v1586 = vsub.f32 %v1505, %v1576
    %v1587 = vsub.f32 %v1551, %v1579
    %v1588 = vmul.f32 %v1580, 1.442695
    %v1589 = vpow.pop %v1588
    %v1590 = vmul.f32 %v1581, 1.442695
    %v1591 = vpow.pop %v1590
    %v1592 = vmul.f32 %v1582, 1.442695
    %v1593 = vpow.pop %v1592
    %v1594 = vmul.f32 %v1583, 1.442695
    %v1595 = vpow.pop %v1594
    %v1596 = vmul.f32 %v1584, 1.442695
    %v1597 = vpow.pop %v1596
    %v1598 = vmul.f32 %v1585, 1.442695
    %v1599 = vpow.pop %v1598
    %v1600 = vmul.f32 %v1586, 1.442695
    %v1601 = vpow.pop %v1600
    %v1602 = vmul.f32 %v1587, 1.442695
    %v1603 = vpow.pop %v1602
    %v1604 = vsel %vm1187, %v1589, 0.0
    %1605 = vadd.xlane.f32.xlu0 %v1604
    %v1606 = vpop.xlane.xlu0 %1605
    %v1607 = vsel %vm1187, %v1591, 0.0
    %1608 = vadd.xlane.f32.xlu0 %v1607
    %v1609 = vpop.xlane.xlu0 %1608
    %v1610 = vsel %vm1187, %v1593, 0.0
    %1611 = vadd.xlane.f32.xlu0 %v1610
    %v1612 = vpop.xlane.xlu0 %1611
    %v1613 = vsel %vm1187, %v1595, 0.0
    %1614 = vadd.xlane.f32.xlu0 %v1613
    %v1615 = vpop.xlane.xlu0 %1614
    %v1616 = vsel %vm1187, %v1597, 0.0
    %1617 = vadd.xlane.f32.xlu0 %v1616
    %v1618 = vpop.xlane.xlu0 %1617
    %v1619 = vsel %vm1187, %v1599, 0.0
    %1620 = vadd.xlane.f32.xlu0 %v1619
    %v1621 = vpop.xlane.xlu0 %1620
    %v1622 = vsel %vm1187, %v1601, 0.0
    %1623 = vadd.xlane.f32.xlu0 %v1622
    %v1624 = vpop.xlane.xlu0 %1623
    %v1625 = vsel %vm1187, %v1603, 0.0
    %1626 = vadd.xlane.f32.xlu0 %v1625
    %v1627 = vpop.xlane.xlu0 %1626
    %v1628 = vpack.c.bf16 %v1589, %v1589
    %v1629 = vpack.c.bf16 %v1591, %v1591
    %v1630 = vpack.c.bf16 %v1593, %v1593
    %v1631 = vpack.c.bf16 %v1595, %v1595
    %v1632 = vpack.c.bf16 %v1597, %v1597
    %v1633 = vpack.c.bf16 %v1599, %v1599
    %v1634 = vpack.c.bf16 %v1601, %v1601
    %v1635 = vpack.c.bf16 %v1603, %v1603
    %v1637 = vsel %vm1187, %v1628, 0
    %vm1639 = vcmask 1043456
    %v1641 = vsel %vm1639, %v1165, 0
    %1643 = vmatprep.subr.bf16.mxu0 0
    %1644 = vmatpush1.bf16.msra.mxu0 0
    %1645 = vmatprep.subr.bf16.mxu0 0
    %1646 = vmatpush1.bf16.msra.mxu0 0
    %1647 = vmatprep.subr.bf16.mxu0 0
    %1648 = vmatpush1.bf16.msra.mxu0 0
    %1649 = vmatprep.subr.bf16.mxu0 0
    %1650 = vmatpush1.bf16.msra.mxu0 0
    %1651 = vmatprep.subr.bf16.mxu0 0
    %1652 = vmatpush1.bf16.msra.mxu0 0
    %1653 = vmatprep.subr.bf16.mxu0 0
    %1654 = vmatpush1.bf16.msra.mxu0 0
    %1655 = vmatprep.subr.bf16.mxu0 0
    %1656 = vmatpush1.bf16.msra.mxu0 0
    %1657 = vmatprep.subr.bf16.mxu0 0
    %1658 = vmatpush1.bf16.msra.mxu0 %v1641
    %1659 = vmatprep.subr.bf16.mxu0 0
    %1660 = vmatpush2.bf16.msra.mxu0 0
    %1661 = vmatprep.subr.bf16.mxu0 0
    %1662 = vmatpush2.bf16.msra.mxu0 0
    %1663 = vmatprep.subr.bf16.mxu0 0
    %1664 = vmatpush2.bf16.msra.mxu0 0
    %1665 = vmatprep.subr.bf16.mxu0 0
    %1666 = vmatpush2.bf16.msra.mxu0 0
    %1667 = vmatprep.subr.bf16.mxu0 0
    %1668 = vmatpush2.bf16.msra.mxu0 0
    %1669 = vmatprep.subr.bf16.mxu0 0
    %1670 = vmatpush2.bf16.msra.mxu0 0
    %1671 = vmatprep.subr.bf16.mxu0 0
    %1672 = vmatpush2.bf16.msra.mxu0 0
    %1673 = vmatprep.subr.bf16.mxu0 0
    %1674 = vmatpush2.bf16.msra.mxu0 0
    %1675 = vmatprep.mubr.bf16.mxu0 0
    %1676 = vmatmul.mubr.bf16.gmra.mxu0 %v1637
    %v1677 = vpop.f32.mrf.mxu0
    %v1678 = vadd.f32 0.0, %v1677
    %v1679 = vpop.f32.mrf.mxu0
    %v1680 = vpop.f32.mrf.mxu0
    %v1681 = vpop.f32.mrf.mxu0
    %1682 = vdwg.mxu0
    %v1684 = vsel %vm1187, %v1629, 0
    %v1687 = vsel %vm1639, %v1168, 0
    %1689 = vmatprep.subr.bf16.mxu0 0
    %1690 = vmatpush1.bf16.msra.mxu0 0
    %1691 = vmatprep.subr.bf16.mxu0 0
    %1692 = vmatpush1.bf16.msra.mxu0 0
    %1693 = vmatprep.subr.bf16.mxu0 0
    %1694 = vmatpush1.bf16.msra.mxu0 0
    %1695 = vmatprep.subr.bf16.mxu0 0
    %1696 = vmatpush1.bf16.msra.mxu0 0
    %1697 = vmatprep.subr.bf16.mxu0 0
    %1698 = vmatpush1.bf16.msra.mxu0 0
    %1699 = vmatprep.subr.bf16.mxu0 0
    %1700 = vmatpush1.bf16.msra.mxu0 0
    %1701 = vmatprep.subr.bf16.mxu0 0
    %1702 = vmatpush1.bf16.msra.mxu0 0
    %1703 = vmatprep.subr.bf16.mxu0 0
    %1704 = vmatpush1.bf16.msra.mxu0 %v1687
    %1705 = vmatprep.subr.bf16.mxu0 0
    %1706 = vmatpush2.bf16.msra.mxu0 0
    %1707 = vmatprep.subr.bf16.mxu0 0
    %1708 = vmatpush2.bf16.msra.mxu0 0
    %1709 = vmatprep.subr.bf16.mxu0 0
    %1710 = vmatpush2.bf16.msra.mxu0 0
    %1711 = vmatprep.subr.bf16.mxu0 0
    %1712 = vmatpush2.bf16.msra.mxu0 0
    %1713 = vmatprep.subr.bf16.mxu0 0
    %1714 = vmatpush2.bf16.msra.mxu0 0
    %1715 = vmatprep.subr.bf16.mxu0 0
    %1716 = vmatpush2.bf16.msra.mxu0 0
    %1717 = vmatprep.subr.bf16.mxu0 0
    %1718 = vmatpush2.bf16.msra.mxu0 0
    %1719 = vmatprep.subr.bf16.mxu0 0
    %1720 = vmatpush2.bf16.msra.mxu0 0
    %1721 = vmatprep.mubr.bf16.mxu0 0
    %1722 = vmatmul.mubr.bf16.gmra.mxu0 %v1684
    %v1723 = vpop.f32.mrf.mxu0
    %v1724 = vadd.f32 0.0, %v1723
    %v1725 = vpop.f32.mrf.mxu0
    %v1726 = vpop.f32.mrf.mxu0
    %v1727 = vpop.f32.mrf.mxu0
    %1728 = vdwg.mxu0
    %v1730 = vsel %vm1187, %v1630, 0
    %v1733 = vsel %vm1639, %v1171, 0
    %1735 = vmatprep.subr.bf16.mxu0 0
    %1736 = vmatpush1.bf16.msra.mxu0 0
    %1737 = vmatprep.subr.bf16.mxu0 0
    %1738 = vmatpush1.bf16.msra.mxu0 0
    %1739 = vmatprep.subr.bf16.mxu0 0
    %1740 = vmatpush1.bf16.msra.mxu0 0
    %1741 = vmatprep.subr.bf16.mxu0 0
    %1742 = vmatpush1.bf16.msra.mxu0 0
    %1743 = vmatprep.subr.bf16.mxu0 0
    %1744 = vmatpush1.bf16.msra.mxu0 0
    %1745 = vmatprep.subr.bf16.mxu0 0
    %1746 = vmatpush1.bf16.msra.mxu0 0
    %1747 = vmatprep.subr.bf16.mxu0 0
    %1748 = vmatpush1.bf16.msra.mxu0 0
    %1749 = vmatprep.subr.bf16.mxu0 0
    %1750 = vmatpush1.bf16.msra.mxu0 %v1733
    %1751 = vmatprep.subr.bf16.mxu0 0
    %1752 = vmatpush2.bf16.msra.mxu0 0
    %1753 = vmatprep.subr.bf16.mxu0 0
    %1754 = vmatpush2.bf16.msra.mxu0 0
    %1755 = vmatprep.subr.bf16.mxu0 0
    %1756 = vmatpush2.bf16.msra.mxu0 0
    %1757 = vmatprep.subr.bf16.mxu0 0
    %1758 = vmatpush2.bf16.msra.mxu0 0
    %1759 = vmatprep.subr.bf16.mxu0 0
    %1760 = vmatpush2.bf16.msra.mxu0 0
    %1761 = vmatprep.subr.bf16.mxu0 0
    %1762 = vmatpush2.bf16.msra.mxu0 0
    %1763 = vmatprep.subr.bf16.mxu0 0
    %1764 = vmatpush2.bf16.msra.mxu0 0
    %1765 = vmatprep.subr.bf16.mxu0 0
    %1766 = vmatpush2.bf16.msra.mxu0 0
    %1767 = vmatprep.mubr.bf16.mxu0 0
    %1768 = vmatmul.mubr.bf16.gmra.mxu0 %v1730
    %v1769 = vpop.f32.mrf.mxu0
    %v1770 = vadd.f32 0.0, %v1769
    %v1771 = vpop.f32.mrf.mxu0
    %v1772 = vpop.f32.mrf.mxu0
    %v1773 = vpop.f32.mrf.mxu0
    %1774 = vdwg.mxu0
    %v1776 = vsel %vm1187, %v1631, 0
    %v1779 = vsel %vm1639, %v1174, 0
    %1781 = vmatprep.subr.bf16.mxu0 0
    %1782 = vmatpush1.bf16.msra.mxu0 0
    %1783 = vmatprep.subr.bf16.mxu0 0
    %1784 = vmatpush1.bf16.msra.mxu0 0
    %1785 = vmatprep.subr.bf16.mxu0 0
    %1786 = vmatpush1.bf16.msra.mxu0 0
    %1787 = vmatprep.subr.bf16.mxu0 0
    %1788 = vmatpush1.bf16.msra.mxu0 0
    %1789 = vmatprep.subr.bf16.mxu0 0
    %1790 = vmatpush1.bf16.msra.mxu0 0
    %1791 = vmatprep.subr.bf16.mxu0 0
    %1792 = vmatpush1.bf16.msra.mxu0 0
    %1793 = vmatprep.subr.bf16.mxu0 0
    %1794 = vmatpush1.bf16.msra.mxu0 0
    %1795 = vmatprep.subr.bf16.mxu0 0
    %1796 = vmatpush1.bf16.msra.mxu0 %v1779
    %1797 = vmatprep.subr.bf16.mxu0 0
    %1798 = vmatpush2.bf16.msra.mxu0 0
    %1799 = vmatprep.subr.bf16.mxu0 0
    %1800 = vmatpush2.bf16.msra.mxu0 0
    %1801 = vmatprep.subr.bf16.mxu0 0
    %1802 = vmatpush2.bf16.msra.mxu0 0
    %1803 = vmatprep.subr.bf16.mxu0 0
    %1804 = vmatpush2.bf16.msra.mxu0 0
    %1805 = vmatprep.subr.bf16.mxu0 0
    %1806 = vmatpush2.bf16.msra.mxu0 0
    %1807 = vmatprep.subr.bf16.mxu0 0
    %1808 = vmatpush2.bf16.msra.mxu0 0
    %1809 = vmatprep.subr.bf16.mxu0 0
    %1810 = vmatpush2.bf16.msra.mxu0 0
    %1811 = vmatprep.subr.bf16.mxu0 0
    %1812 = vmatpush2.bf16.msra.mxu0 0
    %1813 = vmatprep.mubr.bf16.mxu0 0
    %1814 = vmatmul.mubr.bf16.gmra.mxu0 %v1776
    %v1815 = vpop.f32.mrf.mxu0
    %v1816 = vadd.f32 0.0, %v1815
    %v1817 = vpop.f32.mrf.mxu0
    %v1818 = vpop.f32.mrf.mxu0
    %v1819 = vpop.f32.mrf.mxu0
    %1820 = vdwg.mxu0
    %v1822 = vsel %vm1187, %v1632, 0
    %v1825 = vsel %vm1639, %v1177, 0
    %1827 = vmatprep.subr.bf16.mxu0 0
    %1828 = vmatpush1.bf16.msra.mxu0 0
    %1829 = vmatprep.subr.bf16.mxu0 0
    %1830 = vmatpush1.bf16.msra.mxu0 0
    %1831 = vmatprep.subr.bf16.mxu0 0
    %1832 = vmatpush1.bf16.msra.mxu0 0
    %1833 = vmatprep.subr.bf16.mxu0 0
    %1834 = vmatpush1.bf16.msra.mxu0 0
    %1835 = vmatprep.subr.bf16.mxu0 0
    %1836 = vmatpush1.bf16.msra.mxu0 0
    %1837 = vmatprep.subr.bf16.mxu0 0
    %1838 = vmatpush1.bf16.msra.mxu0 0
    %1839 = vmatprep.subr.bf16.mxu0 0
    %1840 = vmatpush1.bf16.msra.mxu0 0
    %1841 = vmatprep.subr.bf16.mxu0 0
    %1842 = vmatpush1.bf16.msra.mxu0 %v1825
    %1843 = vmatprep.subr.bf16.mxu0 0
    %1844 = vmatpush2.bf16.msra.mxu0 0
    %1845 = vmatprep.subr.bf16.mxu0 0
    %1846 = vmatpush2.bf16.msra.mxu0 0
    %1847 = vmatprep.subr.bf16.mxu0 0
    %1848 = vmatpush2.bf16.msra.mxu0 0
    %1849 = vmatprep.subr.bf16.mxu0 0
    %1850 = vmatpush2.bf16.msra.mxu0 0
    %1851 = vmatprep.subr.bf16.mxu0 0
    %1852 = vmatpush2.bf16.msra.mxu0 0
    %1853 = vmatprep.subr.bf16.mxu0 0
    %1854 = vmatpush2.bf16.msra.mxu0 0
    %1855 = vmatprep.subr.bf16.mxu0 0
    %1856 = vmatpush2.bf16.msra.mxu0 0
    %1857 = vmatprep.subr.bf16.mxu0 0
    %1858 = vmatpush2.bf16.msra.mxu0 0
    %1859 = vmatprep.mubr.bf16.mxu0 0
    %1860 = vmatmul.mubr.bf16.gmra.mxu0 %v1822
    %v1861 = vpop.f32.mrf.mxu0
    %v1862 = vadd.f32 0.0, %v1861
    %v1863 = vpop.f32.mrf.mxu0
    %v1864 = vpop.f32.mrf.mxu0
    %v1865 = vpop.f32.mrf.mxu0
    %1866 = vdwg.mxu0
    %v1868 = vsel %vm1187, %v1633, 0
    %v1871 = vsel %vm1639, %v1180, 0
    %1873 = vmatprep.subr.bf16.mxu0 0
    %1874 = vmatpush1.bf16.msra.mxu0 0
    %1875 = vmatprep.subr.bf16.mxu0 0
    %1876 = vmatpush1.bf16.msra.mxu0 0
    %1877 = vmatprep.subr.bf16.mxu0 0
    %1878 = vmatpush1.bf16.msra.mxu0 0
    %1879 = vmatprep.subr.bf16.mxu0 0
    %1880 = vmatpush1.bf16.msra.mxu0 0
    %1881 = vmatprep.subr.bf16.mxu0 0
    %1882 = vmatpush1.bf16.msra.mxu0 0
    %1883 = vmatprep.subr.bf16.mxu0 0
    %1884 = vmatpush1.bf16.msra.mxu0 0
    %1885 = vmatprep.subr.bf16.mxu0 0
    %1886 = vmatpush1.bf16.msra.mxu0 0
    %1887 = vmatprep.subr.bf16.mxu0 0
    %1888 = vmatpush1.bf16.msra.mxu0 %v1871
    %1889 = vmatprep.subr.bf16.mxu0 0
    %1890 = vmatpush2.bf16.msra.mxu0 0
    %1891 = vmatprep.subr.bf16.mxu0 0
    %1892 = vmatpush2.bf16.msra.mxu0 0
    %1893 = vmatprep.subr.bf16.mxu0 0
    %1894 = vmatpush2.bf16.msra.mxu0 0
    %1895 = vmatprep.subr.bf16.mxu0 0
    %1896 = vmatpush2.bf16.msra.mxu0 0
    %1897 = vmatprep.subr.bf16.mxu0 0
    %1898 = vmatpush2.bf16.msra.mxu0 0
    %1899 = vmatprep.subr.bf16.mxu0 0
    %1900 = vmatpush2.bf16.msra.mxu0 0
    %1901 = vmatprep.subr.bf16.mxu0 0
    %1902 = vmatpush2.bf16.msra.mxu0 0
    %1903 = vmatprep.subr.bf16.mxu0 0
    %1904 = vmatpush2.bf16.msra.mxu0 0
    %1905 = vmatprep.mubr.bf16.mxu0 0
    %1906 = vmatmul.mubr.bf16.gmra.mxu0 %v1868
    %v1907 = vpop.f32.mrf.mxu0
    %v1908 = vadd.f32 0.0, %v1907
    %v1909 = vpop.f32.mrf.mxu0
    %v1910 = vpop.f32.mrf.mxu0
    %v1911 = vpop.f32.mrf.mxu0
    %1912 = vdwg.mxu0
    %v1914 = vsel %vm1187, %v1634, 0
    %v1917 = vsel %vm1639, %v1183, 0
    %1919 = vmatprep.subr.bf16.mxu0 0
    %1920 = vmatpush1.bf16.msra.mxu0 0
    %1921 = vmatprep.subr.bf16.mxu0 0
    %1922 = vmatpush1.bf16.msra.mxu0 0
    %1923 = vmatprep.subr.bf16.mxu0 0
    %1924 = vmatpush1.bf16.msra.mxu0 0
    %1925 = vmatprep.subr.bf16.mxu0 0
    %1926 = vmatpush1.bf16.msra.mxu0 0
    %1927 = vmatprep.subr.bf16.mxu0 0
    %1928 = vmatpush1.bf16.msra.mxu0 0
    %1929 = vmatprep.subr.bf16.mxu0 0
    %1930 = vmatpush1.bf16.msra.mxu0 0
    %1931 = vmatprep.subr.bf16.mxu0 0
    %1932 = vmatpush1.bf16.msra.mxu0 0
    %1933 = vmatprep.subr.bf16.mxu0 0
    %1934 = vmatpush1.bf16.msra.mxu0 %v1917
    %1935 = vmatprep.subr.bf16.mxu0 0
    %1936 = vmatpush2.bf16.msra.mxu0 0
    %1937 = vmatprep.subr.bf16.mxu0 0
    %1938 = vmatpush2.bf16.msra.mxu0 0
    %1939 = vmatprep.subr.bf16.mxu0 0
    %1940 = vmatpush2.bf16.msra.mxu0 0
    %1941 = vmatprep.subr.bf16.mxu0 0
    %1942 = vmatpush2.bf16.msra.mxu0 0
    %1943 = vmatprep.subr.bf16.mxu0 0
    %1944 = vmatpush2.bf16.msra.mxu0 0
    %1945 = vmatprep.subr.bf16.mxu0 0
    %1946 = vmatpush2.bf16.msra.mxu0 0
    %1947 = vmatprep.subr.bf16.mxu0 0
    %1948 = vmatpush2.bf16.msra.mxu0 0
    %1949 = vmatprep.subr.bf16.mxu0 0
    %1950 = vmatpush2.bf16.msra.mxu0 0
    %1951 = vmatprep.mubr.bf16.mxu0 0
    %1952 = vmatmul.mubr.bf16.gmra.mxu0 %v1914
    %v1953 = vpop.f32.mrf.mxu0
    %v1954 = vadd.f32 0.0, %v1953
    %v1955 = vpop.f32.mrf.mxu0
    %v1956 = vpop.f32.mrf.mxu0
    %v1957 = vpop.f32.mrf.mxu0
    %1958 = vdwg.mxu0
    %v1960 = vsel %vm1187, %v1635, 0
    %v1963 = vsel %vm1639, %v1186, 0
    %1965 = vmatprep.subr.bf16.mxu0 0
    %1966 = vmatpush1.bf16.msra.mxu0 0
    %1967 = vmatprep.subr.bf16.mxu0 0
    %1968 = vmatpush1.bf16.msra.mxu0 0
    %1969 = vmatprep.subr.bf16.mxu0 0
    %1970 = vmatpush1.bf16.msra.mxu0 0
    %1971 = vmatprep.subr.bf16.mxu0 0
    %1972 = vmatpush1.bf16.msra.mxu0 0
    %1973 = vmatprep.subr.bf16.mxu0 0
    %1974 = vmatpush1.bf16.msra.mxu0 0
    %1975 = vmatprep.subr.bf16.mxu0 0
    %1976 = vmatpush1.bf16.msra.mxu0 0
    %1977 = vmatprep.subr.bf16.mxu0 0
    %1978 = vmatpush1.bf16.msra.mxu0 0
    %1979 = vmatprep.subr.bf16.mxu0 0
    %1980 = vmatpush1.bf16.msra.mxu0 %v1963
    %1981 = vmatprep.subr.bf16.mxu0 0
    %1982 = vmatpush2.bf16.msra.mxu0 0
    %1983 = vmatprep.subr.bf16.mxu0 0
    %1984 = vmatpush2.bf16.msra.mxu0 0
    %1985 = vmatprep.subr.bf16.mxu0 0
    %1986 = vmatpush2.bf16.msra.mxu0 0
    %1987 = vmatprep.subr.bf16.mxu0 0
    %1988 = vmatpush2.bf16.msra.mxu0 0
    %1989 = vmatprep.subr.bf16.mxu0 0
    %1990 = vmatpush2.bf16.msra.mxu0 0
    %1991 = vmatprep.subr.bf16.mxu0 0
    %1992 = vmatpush2.bf16.msra.mxu0 0
    %1993 = vmatprep.subr.bf16.mxu0 0
    %1994 = vmatpush2.bf16.msra.mxu0 0
    %1995 = vmatprep.subr.bf16.mxu0 0
    %1996 = vmatpush2.bf16.msra.mxu0 0
    %1997 = vmatprep.mubr.bf16.mxu0 0
    %1998 = vmatmul.mubr.bf16.gmra.mxu0 %v1960
    %v1999 = vpop.f32.mrf.mxu0
    %v2000 = vadd.f32 0.0, %v1999
    %v2001 = vpop.f32.mrf.mxu0
    %v2002 = vpop.f32.mrf.mxu0
    %v2003 = vpop.f32.mrf.mxu0
    %2004 = vdwg.mxu0
    %v2005 = vrcp.pop %v1606
    %v2006 = vrcp.pop %v1609
    %v2007 = vrcp.pop %v1612
    %v2008 = vrcp.pop %v1615
    %v2009 = vrcp.pop %v1618
    %v2010 = vrcp.pop %v1621
    %v2011 = vrcp.pop %v1624
    %v2012 = vrcp.pop %v1627
    %v2013 = vmul.f32 %v1678, %v2005
    %v2014 = vmul.f32 %v1724, %v2006
    %v2015 = vmul.f32 %v1770, %v2007
    %v2016 = vmul.f32 %v1816, %v2008
    %v2017 = vmul.f32 %v1862, %v2009
    %v2018 = vmul.f32 %v1908, %v2010
    %v2019 = vmul.f32 %v1954, %v2011
    %v2020 = vmul.f32 %v2000, %v2012
    %v2021 = vcombine.low %v2013, %v2015
    %v2022 = vcombine.high %v2013, %v2015
    %v2024 = vunpack.c.l.s4 1983009808
    %v2025 = vunpack.c.0.s8 %v2024
    %v2026 = vlaneseq
    %v2027 = vshrl.u32 %v2026, 7
    %v2028 = vsub.s32 %v2025, %v2027
    %v2029 = vrot.slane %v2021, %v2028
    %v2031 = vunpack.c.l.s4 1983009808
    %v2032 = vunpack.c.0.s8 %v2031
    %v2033 = vlaneseq
    %v2034 = vshrl.u32 %v2033, 7
    %v2035 = vsub.s32 %v2032, %v2034
    %v2036 = vrot.slane %v2022, %v2035
    %v2037 = vcombine.low %v2014, %v2016
    %v2038 = vcombine.high %v2014, %v2016
    %v2040 = vunpack.c.l.s4 1983009808
    %v2041 = vunpack.c.0.s8 %v2040
    %v2042 = vlaneseq
    %v2043 = vshrl.u32 %v2042, 7
    %v2044 = vsub.s32 %v2041, %v2043
    %v2045 = vrot.slane %v2037, %v2044
    %v2047 = vunpack.c.l.s4 1983009808
    %v2048 = vunpack.c.0.s8 %v2047
    %v2049 = vlaneseq
    %v2050 = vshrl.u32 %v2049, 7
    %v2051 = vsub.s32 %v2048, %v2050
    %v2052 = vrot.slane %v2038, %v2051
    %v2053 = vcombine.low %v2029, %v2045
    %v2054 = vcombine.high %v2029, %v2045
    %v2056 = vunpack.c.l.s4 1934713408
    %v2057 = vunpack.c.0.s8 %v2056
    %v2058 = vlaneseq
    %v2059 = vshrl.u32 %v2058, 7
    %v2060 = vsub.s32 %v2057, %v2059
    %v2061 = vrot.slane %v2053, %v2060
    %v2063 = vunpack.c.l.s4 1934713408
    %v2064 = vunpack.c.0.s8 %v2063
    %v2065 = vlaneseq
    %v2066 = vshrl.u32 %v2065, 7
    %v2067 = vsub.s32 %v2064, %v2066
    %v2068 = vrot.slane %v2054, %v2067
    %v2069 = vcombine.low %v2036, %v2052
    %v2070 = vcombine.high %v2036, %v2052
    %v2072 = vunpack.c.l.s4 1934713408
    %v2073 = vunpack.c.0.s8 %v2072
    %v2074 = vlaneseq
    %v2075 = vshrl.u32 %v2074, 7
    %v2076 = vsub.s32 %v2073, %v2075
    %v2077 = vrot.slane %v2069, %v2076
    %v2079 = vunpack.c.l.s4 1934713408
    %v2080 = vunpack.c.0.s8 %v2079
    %v2081 = vlaneseq
    %v2082 = vshrl.u32 %v2081, 7
    %v2083 = vsub.s32 %v2080, %v2082
    %v2084 = vrot.slane %v2070, %v2083
    %v2085 = vcombine.high %v2061, 0.0
    %v2086 = vcombine.high %v2068, 0.0
    %v2087 = vcombine.high %v2077, 0.0
    %v2088 = vcombine.high %v2084, 0.0
    %v2089 = vcombine.low %v2017, %v2019
    %v2090 = vcombine.high %v2017, %v2019
    %v2092 = vunpack.c.l.s4 1983009808
    %v2093 = vunpack.c.0.s8 %v2092
    %v2094 = vlaneseq
    %v2095 = vshrl.u32 %v2094, 7
    %v2096 = vsub.s32 %v2093, %v2095
    %v2097 = vrot.slane %v2089, %v2096
    %v2099 = vunpack.c.l.s4 1983009808
    %v2100 = vunpack.c.0.s8 %v2099
    %v2101 = vlaneseq
    %v2102 = vshrl.u32 %v2101, 7
    %v2103 = vsub.s32 %v2100, %v2102
    %v2104 = vrot.slane %v2090, %v2103
    %v2105 = vcombine.low %v2018, %v2020
    %v2106 = vcombine.high %v2018, %v2020
    %v2108 = vunpack.c.l.s4 1983009808
    %v2109 = vunpack.c.0.s8 %v2108
    %v2110 = vlaneseq
    %v2111 = vshrl.u32 %v2110, 7
    %v2112 = vsub.s32 %v2109, %v2111
    %v2113 = vrot.slane %v2105, %v2112
    %v2115 = vunpack.c.l.s4 1983009808
    %v2116 = vunpack.c.0.s8 %v2115
    %v2117 = vlaneseq
    %v2118 = vshrl.u32 %v2117, 7
    %v2119 = vsub.s32 %v2116, %v2118
    %v2120 = vrot.slane %v2106, %v2119
    %v2121 = vcombine.low %v2097, %v2113
    %v2122 = vcombine.high %v2097, %v2113
    %v2124 = vunpack.c.l.s4 1934713408
    %v2125 = vunpack.c.0.s8 %v2124
    %v2126 = vlaneseq
    %v2127 = vshrl.u32 %v2126, 7
    %v2128 = vsub.s32 %v2125, %v2127
    %v2129 = vrot.slane %v2121, %v2128
    %v2131 = vunpack.c.l.s4 1934713408
    %v2132 = vunpack.c.0.s8 %v2131
    %v2133 = vlaneseq
    %v2134 = vshrl.u32 %v2133, 7
    %v2135 = vsub.s32 %v2132, %v2134
    %v2136 = vrot.slane %v2122, %v2135
    %v2137 = vcombine.low %v2104, %v2120
    %v2138 = vcombine.high %v2104, %v2120
    %v2140 = vunpack.c.l.s4 1934713408
    %v2141 = vunpack.c.0.s8 %v2140
    %v2142 = vlaneseq
    %v2143 = vshrl.u32 %v2142, 7
    %v2144 = vsub.s32 %v2141, %v2143
    %v2145 = vrot.slane %v2137, %v2144
    %v2147 = vunpack.c.l.s4 1934713408
    %v2148 = vunpack.c.0.s8 %v2147
    %v2149 = vlaneseq
    %v2150 = vshrl.u32 %v2149, 7
    %v2151 = vsub.s32 %v2148, %v2150
    %v2152 = vrot.slane %v2138, %v2151
    %v2153 = vcombine.high %v2129, 0.0
    %v2154 = vcombine.high %v2136, 0.0
    %v2155 = vcombine.high %v2145, 0.0
    %v2156 = vcombine.high %v2152, 0.0
    %v2157 = vcombine.low %v2061, %v2085
    %v2159 = vunpack.c.l.s4 1983009808
    %v2160 = vunpack.c.0.s8 %v2159
    %v2161 = vlaneseq
    %v2162 = vshrl.u32 %v2161, 7
    %v2163 = vsub.s32 %v2160, %v2162
    %v2164 = vrot.slane %v2157, %v2163
    %v2165 = vcombine.low %v2129, %v2153
    %v2167 = vunpack.c.l.s4 1983009808
    %v2168 = vunpack.c.0.s8 %v2167
    %v2169 = vlaneseq
    %v2170 = vshrl.u32 %v2169, 7
    %v2171 = vsub.s32 %v2168, %v2170
    %v2172 = vrot.slane %v2165, %v2171
    %v2173 = vcombine.low %v2068, %v2086
    %v2175 = vunpack.c.l.s4 1983009808
    %v2176 = vunpack.c.0.s8 %v2175
    %v2177 = vlaneseq
    %v2178 = vshrl.u32 %v2177, 7
    %v2179 = vsub.s32 %v2176, %v2178
    %v2180 = vrot.slane %v2173, %v2179
    %v2181 = vcombine.low %v2136, %v2154
    %v2183 = vunpack.c.l.s4 1983009808
    %v2184 = vunpack.c.0.s8 %v2183
    %v2185 = vlaneseq
    %v2186 = vshrl.u32 %v2185, 7
    %v2187 = vsub.s32 %v2184, %v2186
    %v2188 = vrot.slane %v2181, %v2187
    %v2189 = vcombine.low %v2164, %v2172
    %v2190 = vcombine.high %v2164, %v2172
    %v2192 = vunpack.c.l.s4 1934713408
    %v2193 = vunpack.c.0.s8 %v2192
    %v2194 = vlaneseq
    %v2195 = vshrl.u32 %v2194, 7
    %v2196 = vsub.s32 %v2193, %v2195
    %v2197 = vrot.slane %v2189, %v2196
    %v2199 = vunpack.c.l.s4 1934713408
    %v2200 = vunpack.c.0.s8 %v2199
    %v2201 = vlaneseq
    %v2202 = vshrl.u32 %v2201, 7
    %v2203 = vsub.s32 %v2200, %v2202
    %v2204 = vrot.slane %v2190, %v2203
    %v2205 = vcombine.low %v2180, %v2188
    %v2206 = vcombine.high %v2180, %v2188
    %v2208 = vunpack.c.l.s4 1934713408
    %v2209 = vunpack.c.0.s8 %v2208
    %v2210 = vlaneseq
    %v2211 = vshrl.u32 %v2210, 7
    %v2212 = vsub.s32 %v2209, %v2211
    %v2213 = vrot.slane %v2205, %v2212
    %v2215 = vunpack.c.l.s4 1934713408
    %v2216 = vunpack.c.0.s8 %v2215
    %v2217 = vlaneseq
    %v2218 = vshrl.u32 %v2217, 7
    %v2219 = vsub.s32 %v2216, %v2218
    %v2220 = vrot.slane %v2206, %v2219
    %v2221 = vcombine.low %v2197, %v2213
    %v2222 = vcombine.high %v2197, %v2213
    %v2223 = vcombine.low %v2204, %v2220
    %v2224 = vcombine.high %v2204, %v2220
    %v2225 = vcombine.low %v2077, %v2087
    %v2227 = vunpack.c.l.s4 1983009808
    %v2228 = vunpack.c.0.s8 %v2227
    %v2229 = vlaneseq
    %v2230 = vshrl.u32 %v2229, 7
    %v2231 = vsub.s32 %v2228, %v2230
    %v2232 = vrot.slane %v2225, %v2231
    %v2233 = vcombine.low %v2145, %v2155
    %v2235 = vunpack.c.l.s4 1983009808
    %v2236 = vunpack.c.0.s8 %v2235
    %v2237 = vlaneseq
    %v2238 = vshrl.u32 %v2237, 7
    %v2239 = vsub.s32 %v2236, %v2238
    %v2240 = vrot.slane %v2233, %v2239
    %v2241 = vcombine.low %v2084, %v2088
    %v2243 = vunpack.c.l.s4 1983009808
    %v2244 = vunpack.c.0.s8 %v2243
    %v2245 = vlaneseq
    %v2246 = vshrl.u32 %v2245, 7
    %v2247 = vsub.s32 %v2244, %v2246
    %v2248 = vrot.slane %v2241, %v2247
    %v2249 = vcombine.low %v2152, %v2156
    %v2251 = vunpack.c.l.s4 1983009808
    %v2252 = vunpack.c.0.s8 %v2251
    %v2253 = vlaneseq
    %v2254 = vshrl.u32 %v2253, 7
    %v2255 = vsub.s32 %v2252, %v2254
    %v2256 = vrot.slane %v2249, %v2255
    %v2257 = vcombine.low %v2232, %v2240
    %v2258 = vcombine.high %v2232, %v2240
    %v2260 = vunpack.c.l.s4 1934713408
    %v2261 = vunpack.c.0.s8 %v2260
    %v2262 = vlaneseq
    %v2263 = vshrl.u32 %v2262, 7
    %v2264 = vsub.s32 %v2261, %v2263
    %v2265 = vrot.slane %v2257, %v2264
    %v2267 = vunpack.c.l.s4 1934713408
    %v2268 = vunpack.c.0.s8 %v2267
    %v2269 = vlaneseq
    %v2270 = vshrl.u32 %v2269, 7
    %v2271 = vsub.s32 %v2268, %v2270
    %v2272 = vrot.slane %v2258, %v2271
    %v2273 = vcombine.low %v2248, %v2256
    %v2274 = vcombine.high %v2248, %v2256
    %v2276 = vunpack.c.l.s4 1934713408
    %v2277 = vunpack.c.0.s8 %v2276
    %v2278 = vlaneseq
    %v2279 = vshrl.u32 %v2278, 7
    %v2280 = vsub.s32 %v2277, %v2279
    %v2281 = vrot.slane %v2273, %v2280
    %v2283 = vunpack.c.l.s4 1934713408
    %v2284 = vunpack.c.0.s8 %v2283
    %v2285 = vlaneseq
    %v2286 = vshrl.u32 %v2285, 7
    %v2287 = vsub.s32 %v2284, %v2286
    %v2288 = vrot.slane %v2274, %v2287
    %v2289 = vcombine.low %v2265, %v2281
    %v2290 = vcombine.high %v2265, %v2281
    %v2291 = vcombine.low %v2272, %v2288
    %v2292 = vcombine.high %v2272, %v2288
    %2295 = vrot.lane.b32.xlu0 %v2222, 8
    %v2296 = vpop.permute.xlu0 %2295
    %2297 = vrot.lane.b32.xlu0 %v2290, 8
    %v2298 = vpop.permute.xlu0 %2297
    %2303 = vrot.lane.b32.xlu0 %v2223, 16
    %v2304 = vpop.permute.xlu0 %2303
    %2305 = vrot.lane.b32.xlu0 %v2291, 16
    %v2306 = vpop.permute.xlu0 %2305
    %2311 = vrot.lane.b32.xlu0 %v2224, 24
    %v2312 = vpop.permute.xlu0 %2311
    %2313 = vrot.lane.b32.xlu0 %v2292, 24
    %v2314 = vpop.permute.xlu0 %2313
    %v2317 = vsel %vm1187, %v2221, %v2296
    %v2318 = vsel %vm1187, %v2289, %v2298
    %vm2319 = vcmask 130048
    %v2320 = vsel %vm2319, %v2317, %v2304
    %v2321 = vsel %vm2319, %v2318, %v2306
    %vm2322 = vcmask 195584
    %v2323 = vsel %vm2322, %v2320, %v2312
    %v2324 = vsel %vm2322, %v2321, %v2314
    %v2325 = vpack.c.bf16 %v2324, %v2323
    %v2326 = vld [vmem:[#allocation8] sm:$0xf]
    %v2327 = vld [vmem:[#allocation8 + $0x4] sm:$0xf]
    %v2328 = vld [vmem:[#allocation8 + $0x8] sm:$0xf]
    %v2329 = vld [vmem:[#allocation8 + $0xc] sm:$0xf]
    %v2330 = vld [vmem:[%s4] sm:$0x1]
    %v2332 = vlaneseq
    %v2333 = vshrl.u32 %v2332, 7
    %v2334 = vsub.s32 0, %v2333
    %v2335 = vrot.slane %v2330, %v2334
    %v2341 = vunpack.c.l.b16 %v2326
    %v2342 = vunpack.c.l.b16 %v2327
    %v2343 = vunpack.c.l.b16 %v2328
    %v2344 = vunpack.c.l.b16 %v2329
    %v2345 = vpack.c.b16 %v2342, %v2341
    %v2346 = vpack.c.b16 %v2344, %v2343
    %v2350 = vsel %vm296, %v2325, 0
    %2352 = vmatprep.subr.bf16.mxu0 0
    %2353 = vmatpush1.bf16.msra.mxu0 0
    %2354 = vmatprep.subr.bf16.mxu0 0
    %2355 = vmatpush1.bf16.msra.mxu0 0
    %2356 = vmatprep.subr.bf16.mxu0 0
    %2357 = vmatpush1.bf16.msra.mxu0 0
    %2358 = vmatprep.subr.bf16.mxu0 0
    %2359 = vmatpush1.bf16.msra.mxu0 0
    %2360 = vmatprep.subr.bf16.mxu0 0
    %2361 = vmatpush1.bf16.msra.mxu0 0
    %2362 = vmatprep.subr.bf16.mxu0 0
    %2363 = vmatpush1.bf16.msra.mxu0 0
    %2364 = vmatprep.subr.bf16.mxu0 0
    %2365 = vmatpush1.bf16.msra.mxu0 %v2346
    %2366 = vmatprep.subr.bf16.mxu0 0
    %2367 = vmatpush1.bf16.msra.mxu0 %v2345
    %2368 = vmatprep.subr.bf16.mxu0 0
    %2369 = vmatpush2.bf16.msra.mxu0 0
    %2370 = vmatprep.subr.bf16.mxu0 0
    %2371 = vmatpush2.bf16.msra.mxu0 0
    %2372 = vmatprep.subr.bf16.mxu0 0
    %2373 = vmatpush2.bf16.msra.mxu0 0
    %2374 = vmatprep.subr.bf16.mxu0 0
    %2375 = vmatpush2.bf16.msra.mxu0 0
    %2376 = vmatprep.subr.bf16.mxu0 0
    %2377 = vmatpush2.bf16.msra.mxu0 0
    %2378 = vmatprep.subr.bf16.mxu0 0
    %2379 = vmatpush2.bf16.msra.mxu0 0
    %2380 = vmatprep.subr.bf16.mxu0 0
    %2381 = vmatpush2.bf16.msra.mxu0 0
    %2382 = vmatprep.subr.bf16.mxu0 0
    %2383 = vmatpush2.bf16.msra.mxu0 0
    %2384 = vmatprep.mubr.bf16.mxu0 0
    %2385 = vmatmul.mubr.bf16.gmra.mxu0 %v2350
    %v2386 = vpop.f32.mrf.mxu0
    %v2387 = vadd.f32 %v2335, %v2386
    %v2388 = vpop.f32.mrf.mxu0
    %v2389 = vpop.f32.mrf.mxu0
    %v2390 = vadd.f32 %v2335, %v2389
    %v2391 = vpop.f32.mrf.mxu0
    %2392 = vdwg.mxu0
    %v2395 = vcombine.high %v2387, %v2387
    %v2397 = vunpack.c.l.s4 1983009808
    %v2398 = vunpack.c.0.s8 %v2397
    %v2399 = vlaneseq
    %v2400 = vshrl.u32 %v2399, 7
    %v2401 = vsub.s32 %v2398, %v2400
    %v2402 = vrot.slane %v2387, %v2401
    %v2404 = vunpack.c.l.s4 1983009808
    %v2405 = vunpack.c.0.s8 %v2404
    %v2406 = vlaneseq
    %v2407 = vshrl.u32 %v2406, 7
    %v2408 = vsub.s32 %v2405, %v2407
    %v2409 = vrot.slane %v2395, %v2408
    %v2410 = vcombine.high %v2402, %v2402
    %v2411 = vcombine.high %v2409, %v2409
    %v2412 = vcombine.high %v2390, %v2390
    %v2414 = vunpack.c.l.s4 1983009808
    %v2415 = vunpack.c.0.s8 %v2414
    %v2416 = vlaneseq
    %v2417 = vshrl.u32 %v2416, 7
    %v2418 = vsub.s32 %v2415, %v2417
    %v2419 = vrot.slane %v2390, %v2418
    %v2421 = vunpack.c.l.s4 1983009808
    %v2422 = vunpack.c.0.s8 %v2421
    %v2423 = vlaneseq
    %v2424 = vshrl.u32 %v2423, 7
    %v2425 = vsub.s32 %v2422, %v2424
    %v2426 = vrot.slane %v2412, %v2425
    %v2427 = vcombine.high %v2419, %v2419
    %v2428 = vcombine.high %v2426, %v2426
    %v2437 = vadd.f32 %v114, %v2402
    %v2438 = vadd.f32 %v115, %v2410
    %v2439 = vadd.f32 %v116, %v2409
    %v2440 = vadd.f32 %v117, %v2411
    %v2441 = vadd.f32 %v118, %v2419
    %v2442 = vadd.f32 %v119, %v2427
    %v2443 = vadd.f32 %v120, %v2426
    %v2444 = vadd.f32 %v121, %v2428
    %v2445 = vsel %vm122, %v2437, 0.0
    %2446 = vadd.xlane.f32.xlu0 %v2445
    %v2447 = vpop.xlane.xlu0 %2446
    %v2448 = vsel %vm122, %v2438, 0.0
    %2449 = vadd.xlane.f32.xlu0 %v2448
    %v2450 = vpop.xlane.xlu0 %2449
    %v2451 = vsel %vm122, %v2439, 0.0
    %2452 = vadd.xlane.f32.xlu0 %v2451
    %v2453 = vpop.xlane.xlu0 %2452
    %v2454 = vsel %vm122, %v2440, 0.0
    %2455 = vadd.xlane.f32.xlu0 %v2454
    %v2456 = vpop.xlane.xlu0 %2455
    %v2457 = vsel %vm122, %v2441, 0.0
    %2458 = vadd.xlane.f32.xlu0 %v2457
    %v2459 = vpop.xlane.xlu0 %2458
    %v2460 = vsel %vm122, %v2442, 0.0
    %2461 = vadd.xlane.f32.xlu0 %v2460
    %v2462 = vpop.xlane.xlu0 %2461
    %v2463 = vsel %vm122, %v2443, 0.0
    %2464 = vadd.xlane.f32.xlu0 %v2463
    %v2465 = vpop.xlane.xlu0 %2464
    %v2466 = vsel %vm122, %v2444, 0.0
    %2467 = vadd.xlane.f32.xlu0 %v2466
    %v2468 = vpop.xlane.xlu0 %2467
    %v2469 = vmul.f32 %v2447, %v147
    %v2470 = vmul.f32 %v2450, %v147
    %v2471 = vmul.f32 %v2453, %v147
    %v2472 = vmul.f32 %v2456, %v147
    %v2473 = vmul.f32 %v2459, %v147
    %v2474 = vmul.f32 %v2462, %v147
    %v2475 = vmul.f32 %v2465, %v147
    %v2476 = vmul.f32 %v2468, %v147
    %v2477 = vsub.f32 %v2437, %v2469
    %v2478 = vsub.f32 %v2438, %v2470
    %v2479 = vsub.f32 %v2439, %v2471
    %v2480 = vsub.f32 %v2440, %v2472
    %v2481 = vsub.f32 %v2441, %v2473
    %v2482 = vsub.f32 %v2442, %v2474
    %v2483 = vsub.f32 %v2443, %v2475
    %v2484 = vsub.f32 %v2444, %v2476
    %v2485 = vmul.f32 %v2477, %v2477
    %v2486 = vmul.f32 %v2478, %v2478
    %v2487 = vmul.f32 %v2479, %v2479
    %v2488 = vmul.f32 %v2480, %v2480
    %v2489 = vmul.f32 %v2481, %v2481
    %v2490 = vmul.f32 %v2482, %v2482
    %v2491 = vmul.f32 %v2483, %v2483
    %v2492 = vmul.f32 %v2484, %v2484
    %v2493 = vsel %vm122, %v2485, 0.0
    %2494 = vadd.xlane.f32.xlu0 %v2493
    %v2495 = vpop.xlane.xlu0 %2494
    %v2496 = vsel %vm122, %v2486, 0.0
    %2497 = vadd.xlane.f32.xlu0 %v2496
    %v2498 = vpop.xlane.xlu0 %2497
    %v2499 = vsel %vm122, %v2487, 0.0
    %2500 = vadd.xlane.f32.xlu0 %v2499
    %v2501 = vpop.xlane.xlu0 %2500
    %v2502 = vsel %vm122, %v2488, 0.0
    %2503 = vadd.xlane.f32.xlu0 %v2502
    %v2504 = vpop.xlane.xlu0 %2503
    %v2505 = vsel %vm122, %v2489, 0.0
    %2506 = vadd.xlane.f32.xlu0 %v2505
    %v2507 = vpop.xlane.xlu0 %2506
    %v2508 = vsel %vm122, %v2490, 0.0
    %2509 = vadd.xlane.f32.xlu0 %v2508
    %v2510 = vpop.xlane.xlu0 %2509
    %v2511 = vsel %vm122, %v2491, 0.0
    %2512 = vadd.xlane.f32.xlu0 %v2511
    %v2513 = vpop.xlane.xlu0 %2512
    %v2514 = vsel %vm122, %v2492, 0.0
    %2515 = vadd.xlane.f32.xlu0 %v2514
    %v2516 = vpop.xlane.xlu0 %2515
    %v2517 = vmul.f32 %v2495, %v147
    %v2518 = vmul.f32 %v2498, %v147
    %v2519 = vmul.f32 %v2501, %v147
    %v2520 = vmul.f32 %v2504, %v147
    %v2521 = vmul.f32 %v2507, %v147
    %v2522 = vmul.f32 %v2510, %v147
    %v2523 = vmul.f32 %v2513, %v147
    %v2524 = vmul.f32 %v2516, %v147
    %v2525 = vadd.f32 %v2517, 1e-05
    %v2526 = vadd.f32 %v2518, 1e-05
    %v2527 = vadd.f32 %v2519, 1e-05
    %v2528 = vadd.f32 %v2520, 1e-05
    %v2529 = vadd.f32 %v2521, 1e-05
    %v2530 = vadd.f32 %v2522, 1e-05
    %v2531 = vadd.f32 %v2523, 1e-05
    %v2532 = vadd.f32 %v2524, 1e-05
    %v2533 = vrsqrt.pop %v2525
    %v2534 = vrsqrt.pop %v2526
    %v2535 = vrsqrt.pop %v2527
    %v2536 = vrsqrt.pop %v2528
    %v2537 = vrsqrt.pop %v2529
    %v2538 = vrsqrt.pop %v2530
    %v2539 = vrsqrt.pop %v2531
    %v2540 = vrsqrt.pop %v2532
    %v2541 = vmul.f32 %v2477, %v2533
    %v2542 = vmul.f32 %v2478, %v2534
    %v2543 = vmul.f32 %v2479, %v2535
    %v2544 = vmul.f32 %v2480, %v2536
    %v2545 = vmul.f32 %v2481, %v2537
    %v2546 = vmul.f32 %v2482, %v2538
    %v2547 = vmul.f32 %v2483, %v2539
    %v2548 = vmul.f32 %v2484, %v2540
    %v2557 = vcombine.low %v2541, %v2542
    %v2558 = vcombine.low %v2543, %v2544
    %v2560 = vunpack.c.l.s4 1983009808
    %v2561 = vunpack.c.0.s8 %v2560
    %v2562 = vlaneseq
    %v2563 = vshrl.u32 %v2562, 7
    %v2564 = vsub.s32 %v2561, %v2563
    %v2565 = vrot.slane %v2557, %v2564
    %v2567 = vunpack.c.l.s4 1983009808
    %v2568 = vunpack.c.0.s8 %v2567
    %v2569 = vlaneseq
    %v2570 = vshrl.u32 %v2569, 7
    %v2571 = vsub.s32 %v2568, %v2570
    %v2572 = vrot.slane %v2558, %v2571
    %v2573 = vcombine.low %v2565, %v2572
    %v2574 = vcombine.low %v2545, %v2546
    %v2575 = vcombine.low %v2547, %v2548
    %v2577 = vunpack.c.l.s4 1983009808
    %v2578 = vunpack.c.0.s8 %v2577
    %v2579 = vlaneseq
    %v2580 = vshrl.u32 %v2579, 7
    %v2581 = vsub.s32 %v2578, %v2580
    %v2582 = vrot.slane %v2574, %v2581
    %v2584 = vunpack.c.l.s4 1983009808
    %v2585 = vunpack.c.0.s8 %v2584
    %v2586 = vlaneseq
    %v2587 = vshrl.u32 %v2586, 7
    %v2588 = vsub.s32 %v2585, %v2587
    %v2589 = vrot.slane %v2575, %v2588
    %v2590 = vcombine.low %v2582, %v2589
    %v2593 = vpack.c.bf16 %v2590, %v2573
    %v2594 = vld [vmem:[#allocation10] sm:$0xf]
    %v2595 = vld [vmem:[#allocation10 + $0x4] sm:$0xf]
    %v2596 = vld [vmem:[#allocation10 + $0x8] sm:$0xf]
    %v2597 = vld [vmem:[#allocation10 + $0xc] sm:$0xf]
    %v2598 = vld [vmem:[%s6] sm:$0x1]
    %v2600 = vlaneseq
    %v2601 = vshrl.u32 %v2600, 7
    %v2602 = vsub.s32 0, %v2601
    %v2603 = vrot.slane %v2598, %v2602
    %v2609 = vunpack.c.l.b16 %v2594
    %v2610 = vunpack.c.l.b16 %v2595
    %v2611 = vunpack.c.l.b16 %v2596
    %v2612 = vunpack.c.l.b16 %v2597
    %v2613 = vpack.c.b16 %v2610, %v2609
    %v2614 = vpack.c.b16 %v2612, %v2611
    %v2618 = vsel %vm296, %v2593, 0
    %2620 = vmatprep.subr.bf16.mxu0 0
    %2621 = vmatpush1.bf16.msra.mxu0 0
    %2622 = vmatprep.subr.bf16.mxu0 0
    %2623 = vmatpush1.bf16.msra.mxu0 0
    %2624 = vmatprep.subr.bf16.mxu0 0
    %2625 = vmatpush1.bf16.msra.mxu0 0
    %2626 = vmatprep.subr.bf16.mxu0 0
    %2627 = vmatpush1.bf16.msra.mxu0 0
    %2628 = vmatprep.subr.bf16.mxu0 0
    %2629 = vmatpush1.bf16.msra.mxu0 0
    %2630 = vmatprep.subr.bf16.mxu0 0
    %2631 = vmatpush1.bf16.msra.mxu0 0
    %2632 = vmatprep.subr.bf16.mxu0 0
    %2633 = vmatpush1.bf16.msra.mxu0 %v2614
    %2634 = vmatprep.subr.bf16.mxu0 0
    %2635 = vmatpush1.bf16.msra.mxu0 %v2613
    %2636 = vmatprep.subr.bf16.mxu0 0
    %2637 = vmatpush2.bf16.msra.mxu0 0
    %2638 = vmatprep.subr.bf16.mxu0 0
    %2639 = vmatpush2.bf16.msra.mxu0 0
    %2640 = vmatprep.subr.bf16.mxu0 0
    %2641 = vmatpush2.bf16.msra.mxu0 0
    %2642 = vmatprep.subr.bf16.mxu0 0
    %2643 = vmatpush2.bf16.msra.mxu0 0
    %2644 = vmatprep.subr.bf16.mxu0 0
    %2645 = vmatpush2.bf16.msra.mxu0 0
    %2646 = vmatprep.subr.bf16.mxu0 0
    %2647 = vmatpush2.bf16.msra.mxu0 0
    %2648 = vmatprep.subr.bf16.mxu0 0
    %2649 = vmatpush2.bf16.msra.mxu0 0
    %2650 = vmatprep.subr.bf16.mxu0 0
    %2651 = vmatpush2.bf16.msra.mxu0 0
    %2652 = vmatprep.mubr.bf16.mxu0 0
    %2653 = vmatmul.mubr.bf16.gmra.mxu0 %v2618
    %v2654 = vpop.f32.mrf.mxu0
    %v2655 = vadd.f32 %v2603, %v2654
    %v2656 = vpop.f32.mrf.mxu0
    %v2657 = vpop.f32.mrf.mxu0
    %v2658 = vadd.f32 %v2603, %v2657
    %v2659 = vpop.f32.mrf.mxu0
    %2660 = vdwg.mxu0
    %v2661 = vmul.f32 %v2655, 1.702
    %v2662 = vmul.f32 %v2658, 1.702
    %v2663 = vxor.u32 %v2661, 2147483648
    %v2664 = vxor.u32 %v2662, 2147483648
    %v2665 = vmul.f32 %v2663, 1.442695
    %v2666 = vpow.pop %v2665
    %v2667 = vmul.f32 %v2664, 1.442695
    %v2668 = vpow.pop %v2667
    %v2669 = vadd.f32 %v2666, 1.0
    %v2670 = vadd.f32 %v2668, 1.0
    %v2671 = vrcp.pop %v2669
    %v2672 = vmul.f32 1.0, %v2671
    %v2673 = vrcp.pop %v2670
    %v2674 = vmul.f32 1.0, %v2673
    %v2675 = vmul.f32 %v2655, %v2672
    %v2676 = vmul.f32 %v2658, %v2674
    %v2677 = vpack.c.bf16 %v2676, %v2675
    %v2678 = vld [vmem:[#allocation11] sm:$0xf]
    %v2679 = vld [vmem:[#allocation11 + $0x4] sm:$0xf]
    %v2680 = vld [vmem:[#allocation11 + $0x8] sm:$0xf]
    %v2681 = vld [vmem:[#allocation11 + $0xc] sm:$0xf]
    %v2682 = vld [vmem:[#allocation11 + $0x10] sm:$0xf]
    %v2683 = vld [vmem:[#allocation11 + $0x14] sm:$0xf]
    %v2684 = vld [vmem:[#allocation11 + $0x18] sm:$0xf]
    %v2685 = vld [vmem:[#allocation11 + $0x1c] sm:$0xf]
    %v2686 = vld [vmem:[#allocation11 + $0x20] sm:$0xf]
    %v2687 = vld [vmem:[#allocation11 + $0x24] sm:$0xf]
    %v2688 = vld [vmem:[#allocation11 + $0x28] sm:$0xf]
    %v2689 = vld [vmem:[#allocation11 + $0x2c] sm:$0xf]
    %v2690 = vld [vmem:[#allocation11 + $0x30] sm:$0xf]
    %v2691 = vld [vmem:[#allocation11 + $0x34] sm:$0xf]
    %v2692 = vld [vmem:[#allocation11 + $0x38] sm:$0xf]
    %v2693 = vld [vmem:[#allocation11 + $0x3c] sm:$0xf]
    %v2694 = vld [vmem:[%s8] sm:$0x1]
    %v2696 = vlaneseq
    %v2697 = vshrl.u32 %v2696, 7
    %v2698 = vsub.s32 0, %v2697
    %v2699 = vrot.slane %v2694, %v2698
    %v2717 = vunpack.c.l.b16 %v2678
    %v2718 = vunpack.c.l.b16 %v2679
    %v2719 = vunpack.c.l.b16 %v2680
    %v2720 = vunpack.c.l.b16 %v2681
    %v2721 = vunpack.c.l.b16 %v2682
    %v2722 = vunpack.c.l.b16 %v2683
    %v2723 = vunpack.c.l.b16 %v2684
    %v2724 = vunpack.c.l.b16 %v2685
    %v2725 = vunpack.c.l.b16 %v2686
    %v2726 = vunpack.c.l.b16 %v2687
    %v2727 = vunpack.c.l.b16 %v2688
    %v2728 = vunpack.c.l.b16 %v2689
    %v2729 = vunpack.c.l.b16 %v2690
    %v2730 = vunpack.c.l.b16 %v2691
    %v2731 = vunpack.c.l.b16 %v2692
    %v2732 = vunpack.c.l.b16 %v2693
    %v2733 = vpack.c.b16 %v2718, %v2717
    %v2734 = vpack.c.b16 %v2720, %v2719
    %v2735 = vpack.c.b16 %v2722, %v2721
    %v2736 = vpack.c.b16 %v2724, %v2723
    %v2737 = vpack.c.b16 %v2726, %v2725
    %v2738 = vpack.c.b16 %v2728, %v2727
    %v2739 = vpack.c.b16 %v2730, %v2729
    %v2740 = vpack.c.b16 %v2732, %v2731
    %2749 = vmatprep.subr.bf16.mxu0 0
    %2750 = vmatpush1.bf16.msra.mxu0 %v2740
    %2751 = vmatprep.subr.bf16.mxu0 0
    %2752 = vmatpush1.bf16.msra.mxu0 %v2739
    %2753 = vmatprep.subr.bf16.mxu0 0
    %2754 = vmatpush1.bf16.msra.mxu0 %v2738
    %2755 = vmatprep.subr.bf16.mxu0 0
    %2756 = vmatpush1.bf16.msra.mxu0 %v2737
    %2757 = vmatprep.subr.bf16.mxu0 0
    %2758 = vmatpush1.bf16.msra.mxu0 %v2736
    %2759 = vmatprep.subr.bf16.mxu0 0
    %2760 = vmatpush1.bf16.msra.mxu0 %v2735
    %2761 = vmatprep.subr.bf16.mxu0 0
    %2762 = vmatpush1.bf16.msra.mxu0 %v2734
    %2763 = vmatprep.subr.bf16.mxu0 0
    %2764 = vmatpush1.bf16.msra.mxu0 %v2733
    %2765 = vmatprep.subr.bf16.mxu0 0
    %2766 = vmatpush2.bf16.msra.mxu0 0
    %2767 = vmatprep.subr.bf16.mxu0 0
    %2768 = vmatpush2.bf16.msra.mxu0 0
    %2769 = vmatprep.subr.bf16.mxu0 0
    %2770 = vmatpush2.bf16.msra.mxu0 0
    %2771 = vmatprep.subr.bf16.mxu0 0
    %2772 = vmatpush2.bf16.msra.mxu0 0
    %2773 = vmatprep.subr.bf16.mxu0 0
    %2774 = vmatpush2.bf16.msra.mxu0 0
    %2775 = vmatprep.subr.bf16.mxu0 0
    %2776 = vmatpush2.bf16.msra.mxu0 0
    %2777 = vmatprep.subr.bf16.mxu0 0
    %2778 = vmatpush2.bf16.msra.mxu0 0
    %2779 = vmatprep.subr.bf16.mxu0 0
    %2780 = vmatpush2.bf16.msra.mxu0 0
    %2781 = vmatprep.mubr.bf16.mxu0 0
    %2782 = vmatmul.mubr.bf16.gmra.mxu0 %v2677
    %v2783 = vpop.f32.mrf.mxu0
    %v2784 = vadd.f32 %v2699, %v2783
    %v2785 = vpop.f32.mrf.mxu0
    %v2786 = vpop.f32.mrf.mxu0
    %v2787 = vadd.f32 %v2699, %v2786
    %v2788 = vpop.f32.mrf.mxu0
    %2789 = vdwg.mxu0
    %v2792 = vcombine.high %v2784, %v2784
    %v2794 = vunpack.c.l.s4 1983009808
    %v2795 = vunpack.c.0.s8 %v2794
    %v2796 = vlaneseq
    %v2797 = vshrl.u32 %v2796, 7
    %v2798 = vsub.s32 %v2795, %v2797
    %v2799 = vrot.slane %v2784, %v2798
    %v2801 = vunpack.c.l.s4 1983009808
    %v2802 = vunpack.c.0.s8 %v2801
    %v2803 = vlaneseq
    %v2804 = vshrl.u32 %v2803, 7
    %v2805 = vsub.s32 %v2802, %v2804
    %v2806 = vrot.slane %v2792, %v2805
    %v2807 = vcombine.high %v2799, %v2799
    %v2808 = vcombine.high %v2806, %v2806
    %v2809 = vcombine.high %v2787, %v2787
    %v2811 = vunpack.c.l.s4 1983009808
    %v2812 = vunpack.c.0.s8 %v2811
    %v2813 = vlaneseq
    %v2814 = vshrl.u32 %v2813, 7
    %v2815 = vsub.s32 %v2812, %v2814
    %v2816 = vrot.slane %v2787, %v2815
    %v2818 = vunpack.c.l.s4 1983009808
    %v2819 = vunpack.c.0.s8 %v2818
    %v2820 = vlaneseq
    %v2821 = vshrl.u32 %v2820, 7
    %v2822 = vsub.s32 %v2819, %v2821
    %v2823 = vrot.slane %v2809, %v2822
    %v2824 = vcombine.high %v2816, %v2816
    %v2825 = vcombine.high %v2823, %v2823
    %v2834 = vadd.f32 %v2437, %v2799
    %v2835 = vadd.f32 %v2438, %v2807
    %v2836 = vadd.f32 %v2439, %v2806
    %v2837 = vadd.f32 %v2440, %v2808
    %v2838 = vadd.f32 %v2441, %v2816
    %v2839 = vadd.f32 %v2442, %v2824
    %v2840 = vadd.f32 %v2443, %v2823
    %v2841 = vadd.f32 %v2444, %v2825
    %2842 = vst.msk [vmem:[#allocation13] sm:$0x3] %vm122, %v2834
    %2843 = vst.msk [vmem:[#allocation13 + $0x2] sm:$0x3] %vm122, %v2835
    %2844 = vst.msk [vmem:[#allocation13 + $0x4] sm:$0x3] %vm122, %v2836
    %2845 = vst.msk [vmem:[#allocation13 + $0x6] sm:$0x3] %vm122, %v2837
    %2846 = vst.msk [vmem:[#allocation13 + $0x8] sm:$0x3] %vm122, %v2838
    %2847 = vst.msk [vmem:[#allocation13 + $0xa] sm:$0x3] %vm122, %v2839
    %2848 = vst.msk [vmem:[#allocation13 + $0xc] sm:$0x3] %vm122, %v2840
    %2849 = vst.msk [vmem:[#allocation13 + $0xe] sm:$0x3] %vm122, %v2841
    // Predicated region
    $region62: #{apply.1} parent=1 // pred_check
      _
    $region63: #{apply.1} parent=1 // pred_check_branch
      %2851 = sbr.rel (0) target = $region65
    $region64: #{apply.1} parent=1 // pred_region
      %s2853 = ssub.s32 256, 256
      %2854 = vsyncadd [#allocation4], %s2853
      %s2855 = sshll.u32 [#allocation13], 4
      %s2856 = int_to_ptr.vmem [resolvable:$true] %s2855
      %2861 = dma.vmem_to_hbm [thread:$0]  %s2856, 256, %s9, [#allocation4], 32, 32, 2
    $region65: #{apply.1} parent=1 // pred_fallthru
      _
    // Predicated region
    $region66: #{apply.1} parent=1 // pred_check
      _
    $region67: #{apply.1} parent=1 // pred_check_branch
      %2863 = sbr.rel (0) target = $region69
    $region68: #{apply.1} parent=1 // pred_region
      %2864 = dma.done [#allocation4], 256
    $region69: #{apply.1} parent=1 // pred_fallthru
      _
    %2865 = vsyncpa [#allocation3], 1
    %2866 = vsyncpa [#allocation6], 1
    %2867 = vsyncpa [#allocation9], 1
    %2868 = vsyncpa [#allocation12], 1
    %2869 = vsyncpa [#allocation4], 1

</llo_original>
